<compile_context>
chip_gen: v6e
topology: v6e:2x2x1
jax: 0.10.0
libtpu: 0.0.40
codegen_flags: <defaults>
</compile_context>

<pallas_src>
import jax
import jax.numpy as jnp
from jax import lax
from jax.experimental import pallas as pl
from jax.experimental.pallas import tpu as pltpu  # noqa: F401  (TPU backend)

NEG_SLOPE = 0.2     # DGL GATConv default LeakyReLU slope
NEG_BIG = -1e30     # additive mask value for non-edges


def _elu(x):
    # ELU; exp() argument clamped so the untaken branch does no large-exp work.
    return jnp.where(x > 0, x, jnp.exp(jnp.minimum(x, 0.0)) - 1.0)


def build_fused_gat_forward(layer_cfgs, num_heads, n_nodes, out_dim):
    """Build the fused forward pass.

    layer_cfgs: list of static per-layer configs with keys
        fin:     input width
        fout:    per-head output width D
        has_res: True -> residual projection packed in the slab
                 False -> identity residual (add input directly)
        elu:     apply ELU activation (hidden layers)
        last:    final layer -> mean over heads folded into the kernel
    """
    H = num_heads
    N = n_nodes

    def kernel(*refs):
        x_ref, mask_ref = refs[0], refs[1]
        out_ref = refs[-1]
        p_refs = refs[2:-1]

        # additive edge mask (0 on edges, -1e30 elsewhere), shared by all layers
        maskb = mask_ref[...]                                   # (N, N) f32

        def gat_layer(hcur, p_ref, fin, D, has_res, apply_elu):
            HD = H * D
            wmain = HD + (HD if has_res else 0) + H
            er_off = 2 * HD if has_res else HD

            # packed per-layer slab (all static window reads)
            w_main = p_ref[0:fin, 0:wmain]              # [W | Wres? | Wer]
            wel_t = p_ref[fin:fin + H, 0:fin]           # Wel^T  (H, fin)
            b_row = p_ref[fin + H:fin + H + 1, 0:HD]    # bias   (1, HD)

            # ONE matmul: features z, residual projection and dst attention term
            zfull = jnp.dot(hcur, w_main, preferred_element_type=jnp.float32)
            z = zfull[:, 0:HD]                                       # (N, HD)
            res = zfull[:, HD:2 * HD] if has_res else hcur           # (N, HD)

            # src attention term with src on the LANE axis (trans_b matmul)
            el_t = jnp.einsum("hf,nf->hn", wel_t, hcur,
                              preferred_element_type=jnp.float32)    # (H, N)

            # per-head scores + edge softmax; alpha assembled into a lane-dense
            # (N, H*N = 128) slab so aggregation is a single K=128 matmul.
            alpha_parts = []
            for h in range(H):
                e = zfull[:, er_off + h:er_off + h + 1] + el_t[h:h + 1, :]  # (N,N)
                e = jnp.maximum(e, NEG_SLOPE * e)       # LeakyReLU
                e = e + maskb                           # additive mask
                m = jnp.max(e, axis=-1, keepdims=True)
                p = jnp.exp(e - m)                      # masked entries -> 0
                s = jnp.sum(p, axis=-1, keepdims=True)
                alpha_parts.append(p * pl.reciprocal(s, approx=True))
            alpha = jnp.concatenate(alpha_parts, axis=1)             # (N, H*N)

            # block-diagonal Z: all-head aggregation in ONE MXU matmul (K=128)
            cio = lax.broadcasted_iota(jnp.int32, (N, HD), 1)
            zbd = jnp.concatenate(
                [jnp.where((cio >= h * D) & (cio < (h + 1) * D), z, 0.0)
                 for h in range(H)], axis=0)                         # (H*N, HD)
            rst = jnp.dot(alpha, zbd, preferred_element_type=jnp.float32)

            o = rst + res + b_row                                    # (N, HD)
            if apply_elu:
                o = _elu(o)
            return o

        hcur = x_ref[...]
        for li, cfg in enumerate(layer_cfgs):
            o = gat_layer(hcur, p_refs[li], cfg["fin"], cfg["fout"],
                          cfg["has_res"], cfg["elu"])
            if cfg["last"]:
                D = cfg["fout"]
                acc = o[:, 0:D]
                for h in range(1, H):
                    acc = acc + o[:, h * D:(h + 1) * D]
                out_ref[...] = (acc * (1.0 / H)).astype(out_ref.dtype)
            else:
                # already lane-dense (N, H*D) == torch flatten(start_dim=1)
                hcur = o

    # N=32: everything is fully VMEM-resident, single invocation (no grid).
    # For large graphs, tile dst rows with a ("parallel",) grid over mask/out
    # row blocks and set an explicit vmem limit (v7x: 2 TCs, 64 MiB VMEM).
    return pl.pallas_call(
        kernel,
        out_shape=jax.ShapeDtypeStruct((n_nodes, out_dim), jnp.float32),
    )


def pack_gat_layer(p, num_heads):
    """Pack one GATConv layer's params into a single slab (host-side):
         rows [0, fin)      cols [0, wmain): [W | Wres? | Wer]
         rows [fin, fin+H)  cols [0, fin)  : Wel^T
         row  fin+H         cols [0, H*D)  : bias (flat, head-major)."""
    W = p["W"]
    fin = W.shape[0]
    D = p["fout"]
    H = num_heads
    HD = H * D
    ar = p["ar"][:, 0, :]                      # (H, D) dst-term vector / head
    al = p["al"][:, 0, :]                      # (H, D) src-term vector / head
    Wer = jnp.stack([W[:, h * D:(h + 1) * D] @ ar[h] for h in range(H)], axis=1)
    Wel = jnp.stack([W[:, h * D:(h + 1) * D] @ al[h] for h in range(H)], axis=1)
    blocks = [W] + ([p["Wres"]] if p["Wres"] is not None else []) + [Wer]
    main = jnp.concatenate(blocks, axis=1)     # (fin, wmain)
    wmain = main.shape[1]
    b_flat = p["b"][:, 0, :].reshape(HD)
    wtot = max(wmain, fin, HD)
    slab = jnp.zeros((fin + 8, wtot), jnp.float32)
    slab = slab.at[:fin, :wmain].set(main)
    slab = slab.at[fin:fin + H, :fin].set(Wel.T)
    slab = slab.at[fin + H, :HD].set(b_flat)
    return slab


def graph_model2_forward(x, adj, params, num_heads):
    """params: list of per-GATConv-layer dicts with keys
       W (Fin, H*D), Wres ((Fin, H*D) or None), al/ar/b (H, 1, D), fout."""
    n_nodes = x.shape[0]
    out_dim = params[-1]["fout"]

    cfgs, slabs = [], []
    for li, p in enumerate(params):
        last = li == len(params) - 1
        cfgs.append(dict(fin=p["W"].shape[0], fout=p["fout"],
                         has_res=p["Wres"] is not None,
                         elu=not last, last=last))
        slabs.append(pack_gat_layer(p, num_heads))

    mask_bias = jnp.where(adj > 0, 0.0, NEG_BIG).astype(jnp.float32)

    fwd = build_fused_gat_forward(cfgs, num_heads, n_nodes, out_dim)
    return fwd(x, mask_bias, *slabs)


def init_gat_layer(key, fin, fout, heads):
    k1, k2, k3, k4, k5 = jax.random.split(key, 5)
    W = (0.1 * jax.random.normal(k1, (fin, heads * fout))).astype(jnp.float32)
    if fin == heads * fout:
        # DGL uses Identity() for res_fc when in_feats == num_heads*out_feats
        Wres = None
    else:
        Wres = (0.1 * jax.random.normal(k2, (fin, heads * fout))).astype(jnp.float32)
    al = (0.1 * jax.random.normal(k3, (heads, 1, fout))).astype(jnp.float32)
    ar = (0.1 * jax.random.normal(k4, (heads, 1, fout))).astype(jnp.float32)
    b = (0.01 * jax.random.normal(k5, (heads, 1, fout))).astype(jnp.float32)
    return dict(W=W, Wres=Wres, al=al, ar=ar, b=b, fout=fout)


def gat_reference(x, adj, params, num_heads):
    """Pure-JAX reference of the same forward pass (sanity check)."""
    mask = adj > 0
    h = x
    H = num_heads
    hp = jax.lax.Precision.HIGHEST
    for li, p in enumerate(params):
        D = p["fout"]
        N = h.shape[0]
        z = jnp.dot(h, p["W"], precision=hp)
        zh = z.reshape(N, H, D)
        al = p["al"][:, 0, :]
        ar = p["ar"][:, 0, :]
        el = jnp.einsum("nhd,hd->nh", zh, al, precision=hp)
        er = jnp.einsum("nhd,hd->nh", zh, ar, precision=hp)
        e = er[:, None, :] + el[None, :, :]              # (dst, src, H)
        e = jnp.where(e >= 0, e, NEG_SLOPE * e)
        e = jnp.where(mask[:, :, None], e, NEG_BIG)
        e = e - jnp.max(e, axis=1, keepdims=True)
        pexp = jnp.exp(e)
        alpha = pexp / jnp.sum(pexp, axis=1, keepdims=True)
        rst = jnp.einsum("ijh,jhk->ihk", alpha, zh, precision=hp)
        res = h if p["Wres"] is None else jnp.dot(h, p["Wres"], precision=hp)
        rst = rst + res.reshape(N, H, D) + p["b"][:, 0, :][None, :, :]
        if li < len(params) - 1:
            rst = jnp.where(rst > 0, rst, jnp.exp(jnp.minimum(rst, 0.0)) - 1.0)
            h = rst.reshape(N, H * D)
        else:
            h = jnp.mean(rst, axis=1)
    return h


if __name__ == "__main__":
    N = 32               # number of graph nodes
    INPUT_SIZE = 16
    HIDDEN_SIZE = 8
    OUTPUT_SIZE = 8
    NUM_HEADS = 4
    N_LAYERS = 2         # -> n_layers + 1 = 3 GATConv layers total

    key = jax.random.PRNGKey(0)
    kx, kadj, kp = jax.random.split(key, 3)

    # node features
    x = jax.random.normal(kx, (N, INPUT_SIZE), dtype=jnp.float32)

    # random sparse graph with self-loops: adj[dst, src]
    adj = (jax.random.uniform(kadj, (N, N)) < 0.2).astype(jnp.float32)
    adj = jnp.maximum(adj, jnp.eye(N, dtype=jnp.float32))

    # layer dims: [in->hid] + (n_layers-1)x[hid*H->hid] + [hid*H->out]
    layer_dims = [(INPUT_SIZE, HIDDEN_SIZE)]
    for _ in range(N_LAYERS - 1):
        layer_dims.append((HIDDEN_SIZE * NUM_HEADS, HIDDEN_SIZE))
    layer_dims.append((HIDDEN_SIZE * NUM_HEADS, OUTPUT_SIZE))

    keys = jax.random.split(kp, len(layer_dims))
    params = [init_gat_layer(k, fin, fout, NUM_HEADS)
              for k, (fin, fout) in zip(keys, layer_dims)]

    out = graph_model2_forward(x, adj, params, NUM_HEADS)
    out = jax.block_until_ready(out)
    assert out.shape == (N, OUTPUT_SIZE), out.shape

    ref = gat_reference(x, adj, params, NUM_HEADS)
    err = float(jnp.max(jnp.abs(out - ref)))
    assert err < 5e-2, f"mismatch vs pure-JAX reference: max abs err {err}"

    print("KERNEL_OK")
</pallas_src>

<mosaic_0001>
module attributes {stable_mosaic.version = 11 : i64} {
  func.func @kernel(%arg0: memref<32x16xf32, #tpu.memory_space<vmem>>, %arg1: memref<32x32xf32, #tpu.memory_space<vmem>>, %arg2: memref<24x68xf32, #tpu.memory_space<vmem>>, %arg3: memref<40x36xf32, #tpu.memory_space<vmem>>, %arg4: memref<40x36xf32, #tpu.memory_space<vmem>>, %arg5: memref<32x8xf32, #tpu.memory_space<vmem>>) attributes {dimension_semantics = [], scalar_prefetch = 0 : i64, scratch_operands = 0 : i64, tpu.core_type = #tpu.core_type<tc>} {
    %c0 = arith.constant 0 : index
    %c0_0 = arith.constant 0 : index
    %0 = vector.load %arg1[%c0, %c0_0] : memref<32x32xf32, #tpu.memory_space<vmem>>, vector<32x32xf32>
    %c0_1 = arith.constant 0 : index
    %c0_2 = arith.constant 0 : index
    %1 = vector.load %arg0[%c0_1, %c0_2] : memref<32x16xf32, #tpu.memory_space<vmem>>, vector<32x16xf32>
    %c0_3 = arith.constant 0 : index
    %c0_4 = arith.constant 0 : index
    %2 = vector.load %arg2[%c0_3, %c0_4] : memref<24x68xf32, #tpu.memory_space<vmem>>, vector<16x68xf32>
    %c16 = arith.constant 16 : index
    %c0_5 = arith.constant 0 : index
    %3 = vector.load %arg2[%c16, %c0_5] : memref<24x68xf32, #tpu.memory_space<vmem>>, vector<4x16xf32>
    %c20 = arith.constant 20 : index
    %c0_6 = arith.constant 0 : index
    %4 = vector.load %arg2[%c20, %c0_6] : memref<24x68xf32, #tpu.memory_space<vmem>>, vector<1x32xf32>
    %cst = arith.constant dense<0.000000e+00> : vector<32x68xf32>
    %5 = tpu.matmul %1, %2, %cst {dimension_numbers = #tpu.dot_dimension_numbers<[1], [0], [0], [1], [0, 0, 1, 1], [], []>} : vector<32x16xf32>, vector<16x68xf32>, vector<32x68xf32> -> vector<32x68xf32>
    %6 = vector.extract_strided_slice %5 {offsets = [0, 0], sizes = [32, 32], strides = [1, 1]} : vector<32x68xf32> to vector<32x32xf32>
    %7 = vector.extract_strided_slice %5 {offsets = [0, 32], sizes = [32, 32], strides = [1, 1]} : vector<32x68xf32> to vector<32x32xf32>
    "tpu.trace_start"() <{level = 10 : i32, message = "hf,nf->hn"}> : () -> ()
    %cst_7 = arith.constant dense<0.000000e+00> : vector<4x32xf32>
    %8 = tpu.matmul %3, %1, %cst_7 {dimension_numbers = #tpu.dot_dimension_numbers<[1], [1], [0], [0], [0, 0, 1, 0], [], []>} : vector<4x16xf32>, vector<32x16xf32>, vector<4x32xf32> -> vector<4x32xf32>
    "tpu.trace_stop"() : () -> ()
    %9 = vector.extract_strided_slice %5 {offsets = [0, 64], sizes = [32, 1], strides = [1, 1]} : vector<32x68xf32> to vector<32x1xf32>
    %10 = vector.extract_strided_slice %8 {offsets = [0, 0], sizes = [1, 32], strides = [1, 1]} : vector<4x32xf32> to vector<1x32xf32>
    %11 = vector.broadcast %9 : vector<32x1xf32> to vector<32x32xf32>
    %12 = vector.broadcast %10 : vector<1x32xf32> to vector<32x32xf32>
    %13 = arith.addf %11, %12 : vector<32x32xf32>
    %cst_8 = arith.constant 2.000000e-01 : f32
    %14 = vector.broadcast %cst_8 : f32 to vector<32x32xf32>
    %15 = arith.mulf %14, %13 : vector<32x32xf32>
    %16 = arith.maximumf %13, %15 : vector<32x32xf32>
    %17 = arith.addf %16, %0 : vector<32x32xf32>
    %cst_9 = arith.constant dense<0xFF800000> : vector<32xf32>
    %18 = vector.multi_reduction <maximumf>, %17, %cst_9 [1] : vector<32x32xf32> to vector<32xf32>
    %19 = vector.shape_cast %18 : vector<32xf32> to vector<32x1xf32>
    %20 = vector.broadcast %19 : vector<32x1xf32> to vector<32x32xf32>
    %21 = arith.subf %17, %20 : vector<32x32xf32>
    %22 = math.exp %21 : vector<32x32xf32>
    %cst_10 = arith.constant dense<0.000000e+00> : vector<32xf32>
    %23 = vector.multi_reduction <add>, %22, %cst_10 [1] : vector<32x32xf32> to vector<32xf32>
    %24 = vector.shape_cast %23 : vector<32xf32> to vector<32x1xf32>
    %25 = tpu.reciprocal %24 {approx = true} : vector<32x1xf32> -> vector<32x1xf32>
    %26 = vector.broadcast %25 : vector<32x1xf32> to vector<32x32xf32>
    %27 = arith.mulf %22, %26 : vector<32x32xf32>
    %28 = vector.extract_strided_slice %5 {offsets = [0, 65], sizes = [32, 1], strides = [1, 1]} : vector<32x68xf32> to vector<32x1xf32>
    %29 = vector.extract_strided_slice %8 {offsets = [1, 0], sizes = [1, 32], strides = [1, 1]} : vector<4x32xf32> to vector<1x32xf32>
    %30 = vector.broadcast %28 : vector<32x1xf32> to vector<32x32xf32>
    %31 = vector.broadcast %29 : vector<1x32xf32> to vector<32x32xf32>
    %32 = arith.addf %30, %31 : vector<32x32xf32>
    %cst_11 = arith.constant 2.000000e-01 : f32
    %33 = vector.broadcast %cst_11 : f32 to vector<32x32xf32>
    %34 = arith.mulf %33, %32 : vector<32x32xf32>
    %35 = arith.maximumf %32, %34 : vector<32x32xf32>
    %36 = arith.addf %35, %0 : vector<32x32xf32>
    %cst_12 = arith.constant dense<0xFF800000> : vector<32xf32>
    %37 = vector.multi_reduction <maximumf>, %36, %cst_12 [1] : vector<32x32xf32> to vector<32xf32>
    %38 = vector.shape_cast %37 : vector<32xf32> to vector<32x1xf32>
    %39 = vector.broadcast %38 : vector<32x1xf32> to vector<32x32xf32>
    %40 = arith.subf %36, %39 : vector<32x32xf32>
    %41 = math.exp %40 : vector<32x32xf32>
    %cst_13 = arith.constant dense<0.000000e+00> : vector<32xf32>
    %42 = vector.multi_reduction <add>, %41, %cst_13 [1] : vector<32x32xf32> to vector<32xf32>
    %43 = vector.shape_cast %42 : vector<32xf32> to vector<32x1xf32>
    %44 = tpu.reciprocal %43 {approx = true} : vector<32x1xf32> -> vector<32x1xf32>
    %45 = vector.broadcast %44 : vector<32x1xf32> to vector<32x32xf32>
    %46 = arith.mulf %41, %45 : vector<32x32xf32>
    %47 = vector.extract_strided_slice %5 {offsets = [0, 66], sizes = [32, 1], strides = [1, 1]} : vector<32x68xf32> to vector<32x1xf32>
    %48 = vector.extract_strided_slice %8 {offsets = [2, 0], sizes = [1, 32], strides = [1, 1]} : vector<4x32xf32> to vector<1x32xf32>
    %49 = vector.broadcast %47 : vector<32x1xf32> to vector<32x32xf32>
    %50 = vector.broadcast %48 : vector<1x32xf32> to vector<32x32xf32>
    %51 = arith.addf %49, %50 : vector<32x32xf32>
    %cst_14 = arith.constant 2.000000e-01 : f32
    %52 = vector.broadcast %cst_14 : f32 to vector<32x32xf32>
    %53 = arith.mulf %52, %51 : vector<32x32xf32>
    %54 = arith.maximumf %51, %53 : vector<32x32xf32>
    %55 = arith.addf %54, %0 : vector<32x32xf32>
    %cst_15 = arith.constant dense<0xFF800000> : vector<32xf32>
    %56 = vector.multi_reduction <maximumf>, %55, %cst_15 [1] : vector<32x32xf32> to vector<32xf32>
    %57 = vector.shape_cast %56 : vector<32xf32> to vector<32x1xf32>
    %58 = vector.broadcast %57 : vector<32x1xf32> to vector<32x32xf32>
    %59 = arith.subf %55, %58 : vector<32x32xf32>
    %60 = math.exp %59 : vector<32x32xf32>
    %cst_16 = arith.constant dense<0.000000e+00> : vector<32xf32>
    %61 = vector.multi_reduction <add>, %60, %cst_16 [1] : vector<32x32xf32> to vector<32xf32>
    %62 = vector.shape_cast %61 : vector<32xf32> to vector<32x1xf32>
    %63 = tpu.reciprocal %62 {approx = true} : vector<32x1xf32> -> vector<32x1xf32>
    %64 = vector.broadcast %63 : vector<32x1xf32> to vector<32x32xf32>
    %65 = arith.mulf %60, %64 : vector<32x32xf32>
    %66 = vector.extract_strided_slice %5 {offsets = [0, 67], sizes = [32, 1], strides = [1, 1]} : vector<32x68xf32> to vector<32x1xf32>
    %67 = vector.extract_strided_slice %8 {offsets = [3, 0], sizes = [1, 32], strides = [1, 1]} : vector<4x32xf32> to vector<1x32xf32>
    %68 = vector.broadcast %66 : vector<32x1xf32> to vector<32x32xf32>
    %69 = vector.broadcast %67 : vector<1x32xf32> to vector<32x32xf32>
    %70 = arith.addf %68, %69 : vector<32x32xf32>
    %cst_17 = arith.constant 2.000000e-01 : f32
    %71 = vector.broadcast %cst_17 : f32 to vector<32x32xf32>
    %72 = arith.mulf %71, %70 : vector<32x32xf32>
    %73 = arith.maximumf %70, %72 : vector<32x32xf32>
    %74 = arith.addf %73, %0 : vector<32x32xf32>
    %cst_18 = arith.constant dense<0xFF800000> : vector<32xf32>
    %75 = vector.multi_reduction <maximumf>, %74, %cst_18 [1] : vector<32x32xf32> to vector<32xf32>
    %76 = vector.shape_cast %75 : vector<32xf32> to vector<32x1xf32>
    %77 = vector.broadcast %76 : vector<32x1xf32> to vector<32x32xf32>
    %78 = arith.subf %74, %77 : vector<32x32xf32>
    %79 = math.exp %78 : vector<32x32xf32>
    %cst_19 = arith.constant dense<0.000000e+00> : vector<32xf32>
    %80 = vector.multi_reduction <add>, %79, %cst_19 [1] : vector<32x32xf32> to vector<32xf32>
    %81 = vector.shape_cast %80 : vector<32xf32> to vector<32x1xf32>
    %82 = tpu.reciprocal %81 {approx = true} : vector<32x1xf32> -> vector<32x1xf32>
    %83 = vector.broadcast %82 : vector<32x1xf32> to vector<32x32xf32>
    %84 = arith.mulf %79, %83 : vector<32x32xf32>
    %85 = tpu.concatenate %27, %46, %65, %84 in 1 : vector<32x32xf32>, vector<32x32xf32>, vector<32x32xf32>, vector<32x32xf32> -> vector<32x128xf32>
    %86 = tpu.iota {dimensions = array<i32: 1>} : vector<32x32xi32>
    %c0_i32 = arith.constant 0 : i32
    %87 = vector.broadcast %c0_i32 : i32 to vector<32x32xi32>
    %88 = arith.cmpi sge, %86, %87 : vector<32x32xi32>
    %c8_i32 = arith.constant 8 : i32
    %89 = vector.broadcast %c8_i32 : i32 to vector<32x32xi32>
    %90 = arith.cmpi slt, %86, %89 : vector<32x32xi32>
    %91 = arith.andi %88, %90 : vector<32x32xi1>
    %cst_20 = arith.constant 0.000000e+00 : f32
    %92 = vector.broadcast %cst_20 : f32 to vector<32x32xf32>
    %93 = arith.select %91, %6, %92 : vector<32x32xi1>, vector<32x32xf32>
    %c8_i32_21 = arith.constant 8 : i32
    %94 = vector.broadcast %c8_i32_21 : i32 to vector<32x32xi32>
    %95 = arith.cmpi sge, %86, %94 : vector<32x32xi32>
    %c16_i32 = arith.constant 16 : i32
    %96 = vector.broadcast %c16_i32 : i32 to vector<32x32xi32>
    %97 = arith.cmpi slt, %86, %96 : vector<32x32xi32>
    %98 = arith.andi %95, %97 : vector<32x32xi1>
    %cst_22 = arith.constant 0.000000e+00 : f32
    %99 = vector.broadcast %cst_22 : f32 to vector<32x32xf32>
    %100 = arith.select %98, %6, %99 : vector<32x32xi1>, vector<32x32xf32>
    %c16_i32_23 = arith.constant 16 : i32
    %101 = vector.broadcast %c16_i32_23 : i32 to vector<32x32xi32>
    %102 = arith.cmpi sge, %86, %101 : vector<32x32xi32>
    %c24_i32 = arith.constant 24 : i32
    %103 = vector.broadcast %c24_i32 : i32 to vector<32x32xi32>
    %104 = arith.cmpi slt, %86, %103 : vector<32x32xi32>
    %105 = arith.andi %102, %104 : vector<32x32xi1>
    %cst_24 = arith.constant 0.000000e+00 : f32
    %106 = vector.broadcast %cst_24 : f32 to vector<32x32xf32>
    %107 = arith.select %105, %6, %106 : vector<32x32xi1>, vector<32x32xf32>
    %c24_i32_25 = arith.constant 24 : i32
    %108 = vector.broadcast %c24_i32_25 : i32 to vector<32x32xi32>
    %109 = arith.cmpi sge, %86, %108 : vector<32x32xi32>
    %c32_i32 = arith.constant 32 : i32
    %110 = vector.broadcast %c32_i32 : i32 to vector<32x32xi32>
    %111 = arith.cmpi slt, %86, %110 : vector<32x32xi32>
    %112 = arith.andi %109, %111 : vector<32x32xi1>
    %cst_26 = arith.constant 0.000000e+00 : f32
    %113 = vector.broadcast %cst_26 : f32 to vector<32x32xf32>
    %114 = arith.select %112, %6, %113 : vector<32x32xi1>, vector<32x32xf32>
    %115 = tpu.concatenate %93, %100, %107, %114 in 0 : vector<32x32xf32>, vector<32x32xf32>, vector<32x32xf32>, vector<32x32xf32> -> vector<128x32xf32>
    %cst_27 = arith.constant dense<0.000000e+00> : vector<32x32xf32>
    %116 = tpu.matmul %85, %115, %cst_27 {dimension_numbers = #tpu.dot_dimension_numbers<[1], [0], [0], [1], [0, 0, 1, 1], [], []>} : vector<32x128xf32>, vector<128x32xf32>, vector<32x32xf32> -> vector<32x32xf32>
    %117 = arith.addf %116, %7 : vector<32x32xf32>
    %118 = vector.broadcast %4 : vector<1x32xf32> to vector<32x32xf32>
    %119 = arith.addf %117, %118 : vector<32x32xf32>
    %cst_28 = arith.constant 0.000000e+00 : f32
    %120 = vector.broadcast %cst_28 : f32 to vector<32x32xf32>
    %121 = arith.cmpf ogt, %119, %120 : vector<32x32xf32>
    %cst_29 = arith.constant 0.000000e+00 : f32
    %122 = vector.broadcast %cst_29 : f32 to vector<32x32xf32>
    %123 = arith.minimumf %119, %122 : vector<32x32xf32>
    %124 = math.exp %123 : vector<32x32xf32>
    %cst_30 = arith.constant 1.000000e+00 : f32
    %125 = vector.broadcast %cst_30 : f32 to vector<32x32xf32>
    %126 = arith.subf %124, %125 : vector<32x32xf32>
    %127 = arith.select %121, %119, %126 : vector<32x32xi1>, vector<32x32xf32>
    %c0_31 = arith.constant 0 : index
    %c0_32 = arith.constant 0 : index
    %128 = vector.load %arg3[%c0_31, %c0_32] : memref<40x36xf32, #tpu.memory_space<vmem>>, vector<32x36xf32>
    %c32 = arith.constant 32 : index
    %c0_33 = arith.constant 0 : index
    %129 = vector.load %arg3[%c32, %c0_33] : memref<40x36xf32, #tpu.memory_space<vmem>>, vector<4x32xf32>
    %c36 = arith.constant 36 : index
    %c0_34 = arith.constant 0 : index
    %130 = vector.load %arg3[%c36, %c0_34] : memref<40x36xf32, #tpu.memory_space<vmem>>, vector<1x32xf32>
    %cst_35 = arith.constant dense<0.000000e+00> : vector<32x36xf32>
    %131 = tpu.matmul %127, %128, %cst_35 {dimension_numbers = #tpu.dot_dimension_numbers<[1], [0], [0], [1], [0, 0, 1, 1], [], []>} : vector<32x32xf32>, vector<32x36xf32>, vector<32x36xf32> -> vector<32x36xf32>
    %132 = vector.extract_strided_slice %131 {offsets = [0, 0], sizes = [32, 32], strides = [1, 1]} : vector<32x36xf32> to vector<32x32xf32>
    "tpu.trace_start"() <{level = 10 : i32, message = "hf,nf->hn"}> : () -> ()
    %cst_36 = arith.constant dense<0.000000e+00> : vector<4x32xf32>
    %133 = tpu.matmul %129, %127, %cst_36 {dimension_numbers = #tpu.dot_dimension_numbers<[1], [1], [0], [0], [0, 0, 1, 0], [], []>} : vector<4x32xf32>, vector<32x32xf32>, vector<4x32xf32> -> vector<4x32xf32>
    "tpu.trace_stop"() : () -> ()
    %134 = vector.extract_strided_slice %131 {offsets = [0, 32], sizes = [32, 1], strides = [1, 1]} : vector<32x36xf32> to vector<32x1xf32>
    %135 = vector.extract_strided_slice %133 {offsets = [0, 0], sizes = [1, 32], strides = [1, 1]} : vector<4x32xf32> to vector<1x32xf32>
    %136 = vector.broadcast %134 : vector<32x1xf32> to vector<32x32xf32>
    %137 = vector.broadcast %135 : vector<1x32xf32> to vector<32x32xf32>
    %138 = arith.addf %136, %137 : vector<32x32xf32>
    %cst_37 = arith.constant 2.000000e-01 : f32
    %139 = vector.broadcast %cst_37 : f32 to vector<32x32xf32>
    %140 = arith.mulf %139, %138 : vector<32x32xf32>
    %141 = arith.maximumf %138, %140 : vector<32x32xf32>
    %142 = arith.addf %141, %0 : vector<32x32xf32>
    %cst_38 = arith.constant dense<0xFF800000> : vector<32xf32>
    %143 = vector.multi_reduction <maximumf>, %142, %cst_38 [1] : vector<32x32xf32> to vector<32xf32>
    %144 = vector.shape_cast %143 : vector<32xf32> to vector<32x1xf32>
    %145 = vector.broadcast %144 : vector<32x1xf32> to vector<32x32xf32>
    %146 = arith.subf %142, %145 : vector<32x32xf32>
    %147 = math.exp %146 : vector<32x32xf32>
    %cst_39 = arith.constant dense<0.000000e+00> : vector<32xf32>
    %148 = vector.multi_reduction <add>, %147, %cst_39 [1] : vector<32x32xf32> to vector<32xf32>
    %149 = vector.shape_cast %148 : vector<32xf32> to vector<32x1xf32>
    %150 = tpu.reciprocal %149 {approx = true} : vector<32x1xf32> -> vector<32x1xf32>
    %151 = vector.broadcast %150 : vector<32x1xf32> to vector<32x32xf32>
    %152 = arith.mulf %147, %151 : vector<32x32xf32>
    %153 = vector.extract_strided_slice %131 {offsets = [0, 33], sizes = [32, 1], strides = [1, 1]} : vector<32x36xf32> to vector<32x1xf32>
    %154 = vector.extract_strided_slice %133 {offsets = [1, 0], sizes = [1, 32], strides = [1, 1]} : vector<4x32xf32> to vector<1x32xf32>
    %155 = vector.broadcast %153 : vector<32x1xf32> to vector<32x32xf32>
    %156 = vector.broadcast %154 : vector<1x32xf32> to vector<32x32xf32>
    %157 = arith.addf %155, %156 : vector<32x32xf32>
    %cst_40 = arith.constant 2.000000e-01 : f32
    %158 = vector.broadcast %cst_40 : f32 to vector<32x32xf32>
    %159 = arith.mulf %158, %157 : vector<32x32xf32>
    %160 = arith.maximumf %157, %159 : vector<32x32xf32>
    %161 = arith.addf %160, %0 : vector<32x32xf32>
    %cst_41 = arith.constant dense<0xFF800000> : vector<32xf32>
    %162 = vector.multi_reduction <maximumf>, %161, %cst_41 [1] : vector<32x32xf32> to vector<32xf32>
    %163 = vector.shape_cast %162 : vector<32xf32> to vector<32x1xf32>
    %164 = vector.broadcast %163 : vector<32x1xf32> to vector<32x32xf32>
    %165 = arith.subf %161, %164 : vector<32x32xf32>
    %166 = math.exp %165 : vector<32x32xf32>
    %cst_42 = arith.constant dense<0.000000e+00> : vector<32xf32>
    %167 = vector.multi_reduction <add>, %166, %cst_42 [1] : vector<32x32xf32> to vector<32xf32>
    %168 = vector.shape_cast %167 : vector<32xf32> to vector<32x1xf32>
    %169 = tpu.reciprocal %168 {approx = true} : vector<32x1xf32> -> vector<32x1xf32>
    %170 = vector.broadcast %169 : vector<32x1xf32> to vector<32x32xf32>
    %171 = arith.mulf %166, %170 : vector<32x32xf32>
    %172 = vector.extract_strided_slice %131 {offsets = [0, 34], sizes = [32, 1], strides = [1, 1]} : vector<32x36xf32> to vector<32x1xf32>
    %173 = vector.extract_strided_slice %133 {offsets = [2, 0], sizes = [1, 32], strides = [1, 1]} : vector<4x32xf32> to vector<1x32xf32>
    %174 = vector.broadcast %172 : vector<32x1xf32> to vector<32x32xf32>
    %175 = vector.broadcast %173 : vector<1x32xf32> to vector<32x32xf32>
    %176 = arith.addf %174, %175 : vector<32x32xf32>
    %cst_43 = arith.constant 2.000000e-01 : f32
    %177 = vector.broadcast %cst_43 : f32 to vector<32x32xf32>
    %178 = arith.mulf %177, %176 : vector<32x32xf32>
    %179 = arith.maximumf %176, %178 : vector<32x32xf32>
    %180 = arith.addf %179, %0 : vector<32x32xf32>
    %cst_44 = arith.constant dense<0xFF800000> : vector<32xf32>
    %181 = vector.multi_reduction <maximumf>, %180, %cst_44 [1] : vector<32x32xf32> to vector<32xf32>
    %182 = vector.shape_cast %181 : vector<32xf32> to vector<32x1xf32>
    %183 = vector.broadcast %182 : vector<32x1xf32> to vector<32x32xf32>
    %184 = arith.subf %180, %183 : vector<32x32xf32>
    %185 = math.exp %184 : vector<32x32xf32>
    %cst_45 = arith.constant dense<0.000000e+00> : vector<32xf32>
    %186 = vector.multi_reduction <add>, %185, %cst_45 [1] : vector<32x32xf32> to vector<32xf32>
    %187 = vector.shape_cast %186 : vector<32xf32> to vector<32x1xf32>
    %188 = tpu.reciprocal %187 {approx = true} : vector<32x1xf32> -> vector<32x1xf32>
    %189 = vector.broadcast %188 : vector<32x1xf32> to vector<32x32xf32>
    %190 = arith.mulf %185, %189 : vector<32x32xf32>
    %191 = vector.extract_strided_slice %131 {offsets = [0, 35], sizes = [32, 1], strides = [1, 1]} : vector<32x36xf32> to vector<32x1xf32>
    %192 = vector.extract_strided_slice %133 {offsets = [3, 0], sizes = [1, 32], strides = [1, 1]} : vector<4x32xf32> to vector<1x32xf32>
    %193 = vector.broadcast %191 : vector<32x1xf32> to vector<32x32xf32>
    %194 = vector.broadcast %192 : vector<1x32xf32> to vector<32x32xf32>
    %195 = arith.addf %193, %194 : vector<32x32xf32>
    %cst_46 = arith.constant 2.000000e-01 : f32
    %196 = vector.broadcast %cst_46 : f32 to vector<32x32xf32>
    %197 = arith.mulf %196, %195 : vector<32x32xf32>
    %198 = arith.maximumf %195, %197 : vector<32x32xf32>
    %199 = arith.addf %198, %0 : vector<32x32xf32>
    %cst_47 = arith.constant dense<0xFF800000> : vector<32xf32>
    %200 = vector.multi_reduction <maximumf>, %199, %cst_47 [1] : vector<32x32xf32> to vector<32xf32>
    %201 = vector.shape_cast %200 : vector<32xf32> to vector<32x1xf32>
    %202 = vector.broadcast %201 : vector<32x1xf32> to vector<32x32xf32>
    %203 = arith.subf %199, %202 : vector<32x32xf32>
    %204 = math.exp %203 : vector<32x32xf32>
    %cst_48 = arith.constant dense<0.000000e+00> : vector<32xf32>
    %205 = vector.multi_reduction <add>, %204, %cst_48 [1] : vector<32x32xf32> to vector<32xf32>
    %206 = vector.shape_cast %205 : vector<32xf32> to vector<32x1xf32>
    %207 = tpu.reciprocal %206 {approx = true} : vector<32x1xf32> -> vector<32x1xf32>
    %208 = vector.broadcast %207 : vector<32x1xf32> to vector<32x32xf32>
    %209 = arith.mulf %204, %208 : vector<32x32xf32>
    %210 = tpu.concatenate %152, %171, %190, %209 in 1 : vector<32x32xf32>, vector<32x32xf32>, vector<32x32xf32>, vector<32x32xf32> -> vector<32x128xf32>
    %211 = tpu.iota {dimensions = array<i32: 1>} : vector<32x32xi32>
    %c0_i32_49 = arith.constant 0 : i32
    %212 = vector.broadcast %c0_i32_49 : i32 to vector<32x32xi32>
    %213 = arith.cmpi sge, %211, %212 : vector<32x32xi32>
    %c8_i32_50 = arith.constant 8 : i32
    %214 = vector.broadcast %c8_i32_50 : i32 to vector<32x32xi32>
    %215 = arith.cmpi slt, %211, %214 : vector<32x32xi32>
    %216 = arith.andi %213, %215 : vector<32x32xi1>
    %cst_51 = arith.constant 0.000000e+00 : f32
    %217 = vector.broadcast %cst_51 : f32 to vector<32x32xf32>
    %218 = arith.select %216, %132, %217 : vector<32x32xi1>, vector<32x32xf32>
    %c8_i32_52 = arith.constant 8 : i32
    %219 = vector.broadcast %c8_i32_52 : i32 to vector<32x32xi32>
    %220 = arith.cmpi sge, %211, %219 : vector<32x32xi32>
    %c16_i32_53 = arith.constant 16 : i32
    %221 = vector.broadcast %c16_i32_53 : i32 to vector<32x32xi32>
    %222 = arith.cmpi slt, %211, %221 : vector<32x32xi32>
    %223 = arith.andi %220, %222 : vector<32x32xi1>
    %cst_54 = arith.constant 0.000000e+00 : f32
    %224 = vector.broadcast %cst_54 : f32 to vector<32x32xf32>
    %225 = arith.select %223, %132, %224 : vector<32x32xi1>, vector<32x32xf32>
    %c16_i32_55 = arith.constant 16 : i32
    %226 = vector.broadcast %c16_i32_55 : i32 to vector<32x32xi32>
    %227 = arith.cmpi sge, %211, %226 : vector<32x32xi32>
    %c24_i32_56 = arith.constant 24 : i32
    %228 = vector.broadcast %c24_i32_56 : i32 to vector<32x32xi32>
    %229 = arith.cmpi slt, %211, %228 : vector<32x32xi32>
    %230 = arith.andi %227, %229 : vector<32x32xi1>
    %cst_57 = arith.constant 0.000000e+00 : f32
    %231 = vector.broadcast %cst_57 : f32 to vector<32x32xf32>
    %232 = arith.select %230, %132, %231 : vector<32x32xi1>, vector<32x32xf32>
    %c24_i32_58 = arith.constant 24 : i32
    %233 = vector.broadcast %c24_i32_58 : i32 to vector<32x32xi32>
    %234 = arith.cmpi sge, %211, %233 : vector<32x32xi32>
    %c32_i32_59 = arith.constant 32 : i32
    %235 = vector.broadcast %c32_i32_59 : i32 to vector<32x32xi32>
    %236 = arith.cmpi slt, %211, %235 : vector<32x32xi32>
    %237 = arith.andi %234, %236 : vector<32x32xi1>
    %cst_60 = arith.constant 0.000000e+00 : f32
    %238 = vector.broadcast %cst_60 : f32 to vector<32x32xf32>
    %239 = arith.select %237, %132, %238 : vector<32x32xi1>, vector<32x32xf32>
    %240 = tpu.concatenate %218, %225, %232, %239 in 0 : vector<32x32xf32>, vector<32x32xf32>, vector<32x32xf32>, vector<32x32xf32> -> vector<128x32xf32>
    %cst_61 = arith.constant dense<0.000000e+00> : vector<32x32xf32>
    %241 = tpu.matmul %210, %240, %cst_61 {dimension_numbers = #tpu.dot_dimension_numbers<[1], [0], [0], [1], [0, 0, 1, 1], [], []>} : vector<32x128xf32>, vector<128x32xf32>, vector<32x32xf32> -> vector<32x32xf32>
    %242 = arith.addf %241, %127 : vector<32x32xf32>
    %243 = vector.broadcast %130 : vector<1x32xf32> to vector<32x32xf32>
    %244 = arith.addf %242, %243 : vector<32x32xf32>
    %cst_62 = arith.constant 0.000000e+00 : f32
    %245 = vector.broadcast %cst_62 : f32 to vector<32x32xf32>
    %246 = arith.cmpf ogt, %244, %245 : vector<32x32xf32>
    %cst_63 = arith.constant 0.000000e+00 : f32
    %247 = vector.broadcast %cst_63 : f32 to vector<32x32xf32>
    %248 = arith.minimumf %244, %247 : vector<32x32xf32>
    %249 = math.exp %248 : vector<32x32xf32>
    %cst_64 = arith.constant 1.000000e+00 : f32
    %250 = vector.broadcast %cst_64 : f32 to vector<32x32xf32>
    %251 = arith.subf %249, %250 : vector<32x32xf32>
    %252 = arith.select %246, %244, %251 : vector<32x32xi1>, vector<32x32xf32>
    %c0_65 = arith.constant 0 : index
    %c0_66 = arith.constant 0 : index
    %253 = vector.load %arg4[%c0_65, %c0_66] : memref<40x36xf32, #tpu.memory_space<vmem>>, vector<32x36xf32>
    %c32_67 = arith.constant 32 : index
    %c0_68 = arith.constant 0 : index
    %254 = vector.load %arg4[%c32_67, %c0_68] : memref<40x36xf32, #tpu.memory_space<vmem>>, vector<4x32xf32>
    %c36_69 = arith.constant 36 : index
    %c0_70 = arith.constant 0 : index
    %255 = vector.load %arg4[%c36_69, %c0_70] : memref<40x36xf32, #tpu.memory_space<vmem>>, vector<1x32xf32>
    %cst_71 = arith.constant dense<0.000000e+00> : vector<32x36xf32>
    %256 = tpu.matmul %252, %253, %cst_71 {dimension_numbers = #tpu.dot_dimension_numbers<[1], [0], [0], [1], [0, 0, 1, 1], [], []>} : vector<32x32xf32>, vector<32x36xf32>, vector<32x36xf32> -> vector<32x36xf32>
    %257 = vector.extract_strided_slice %256 {offsets = [0, 0], sizes = [32, 32], strides = [1, 1]} : vector<32x36xf32> to vector<32x32xf32>
    "tpu.trace_start"() <{level = 10 : i32, message = "hf,nf->hn"}> : () -> ()
    %cst_72 = arith.constant dense<0.000000e+00> : vector<4x32xf32>
    %258 = tpu.matmul %254, %252, %cst_72 {dimension_numbers = #tpu.dot_dimension_numbers<[1], [1], [0], [0], [0, 0, 1, 0], [], []>} : vector<4x32xf32>, vector<32x32xf32>, vector<4x32xf32> -> vector<4x32xf32>
    "tpu.trace_stop"() : () -> ()
    %259 = vector.extract_strided_slice %256 {offsets = [0, 32], sizes = [32, 1], strides = [1, 1]} : vector<32x36xf32> to vector<32x1xf32>
    %260 = vector.extract_strided_slice %258 {offsets = [0, 0], sizes = [1, 32], strides = [1, 1]} : vector<4x32xf32> to vector<1x32xf32>
    %261 = vector.broadcast %259 : vector<32x1xf32> to vector<32x32xf32>
    %262 = vector.broadcast %260 : vector<1x32xf32> to vector<32x32xf32>
    %263 = arith.addf %261, %262 : vector<32x32xf32>
    %cst_73 = arith.constant 2.000000e-01 : f32
    %264 = vector.broadcast %cst_73 : f32 to vector<32x32xf32>
    %265 = arith.mulf %264, %263 : vector<32x32xf32>
    %266 = arith.maximumf %263, %265 : vector<32x32xf32>
    %267 = arith.addf %266, %0 : vector<32x32xf32>
    %cst_74 = arith.constant dense<0xFF800000> : vector<32xf32>
    %268 = vector.multi_reduction <maximumf>, %267, %cst_74 [1] : vector<32x32xf32> to vector<32xf32>
    %269 = vector.shape_cast %268 : vector<32xf32> to vector<32x1xf32>
    %270 = vector.broadcast %269 : vector<32x1xf32> to vector<32x32xf32>
    %271 = arith.subf %267, %270 : vector<32x32xf32>
    %272 = math.exp %271 : vector<32x32xf32>
    %cst_75 = arith.constant dense<0.000000e+00> : vector<32xf32>
    %273 = vector.multi_reduction <add>, %272, %cst_75 [1] : vector<32x32xf32> to vector<32xf32>
    %274 = vector.shape_cast %273 : vector<32xf32> to vector<32x1xf32>
    %275 = tpu.reciprocal %274 {approx = true} : vector<32x1xf32> -> vector<32x1xf32>
    %276 = vector.broadcast %275 : vector<32x1xf32> to vector<32x32xf32>
    %277 = arith.mulf %272, %276 : vector<32x32xf32>
    %278 = vector.extract_strided_slice %256 {offsets = [0, 33], sizes = [32, 1], strides = [1, 1]} : vector<32x36xf32> to vector<32x1xf32>
    %279 = vector.extract_strided_slice %258 {offsets = [1, 0], sizes = [1, 32], strides = [1, 1]} : vector<4x32xf32> to vector<1x32xf32>
    %280 = vector.broadcast %278 : vector<32x1xf32> to vector<32x32xf32>
    %281 = vector.broadcast %279 : vector<1x32xf32> to vector<32x32xf32>
    %282 = arith.addf %280, %281 : vector<32x32xf32>
    %cst_76 = arith.constant 2.000000e-01 : f32
    %283 = vector.broadcast %cst_76 : f32 to vector<32x32xf32>
    %284 = arith.mulf %283, %282 : vector<32x32xf32>
    %285 = arith.maximumf %282, %284 : vector<32x32xf32>
    %286 = arith.addf %285, %0 : vector<32x32xf32>
    %cst_77 = arith.constant dense<0xFF800000> : vector<32xf32>
    %287 = vector.multi_reduction <maximumf>, %286, %cst_77 [1] : vector<32x32xf32> to vector<32xf32>
    %288 = vector.shape_cast %287 : vector<32xf32> to vector<32x1xf32>
    %289 = vector.broadcast %288 : vector<32x1xf32> to vector<32x32xf32>
    %290 = arith.subf %286, %289 : vector<32x32xf32>
    %291 = math.exp %290 : vector<32x32xf32>
    %cst_78 = arith.constant dense<0.000000e+00> : vector<32xf32>
    %292 = vector.multi_reduction <add>, %291, %cst_78 [1] : vector<32x32xf32> to vector<32xf32>
    %293 = vector.shape_cast %292 : vector<32xf32> to vector<32x1xf32>
    %294 = tpu.reciprocal %293 {approx = true} : vector<32x1xf32> -> vector<32x1xf32>
    %295 = vector.broadcast %294 : vector<32x1xf32> to vector<32x32xf32>
    %296 = arith.mulf %291, %295 : vector<32x32xf32>
    %297 = vector.extract_strided_slice %256 {offsets = [0, 34], sizes = [32, 1], strides = [1, 1]} : vector<32x36xf32> to vector<32x1xf32>
    %298 = vector.extract_strided_slice %258 {offsets = [2, 0], sizes = [1, 32], strides = [1, 1]} : vector<4x32xf32> to vector<1x32xf32>
    %299 = vector.broadcast %297 : vector<32x1xf32> to vector<32x32xf32>
    %300 = vector.broadcast %298 : vector<1x32xf32> to vector<32x32xf32>
    %301 = arith.addf %299, %300 : vector<32x32xf32>
    %cst_79 = arith.constant 2.000000e-01 : f32
    %302 = vector.broadcast %cst_79 : f32 to vector<32x32xf32>
    %303 = arith.mulf %302, %301 : vector<32x32xf32>
    %304 = arith.maximumf %301, %303 : vector<32x32xf32>
    %305 = arith.addf %304, %0 : vector<32x32xf32>
    %cst_80 = arith.constant dense<0xFF800000> : vector<32xf32>
    %306 = vector.multi_reduction <maximumf>, %305, %cst_80 [1] : vector<32x32xf32> to vector<32xf32>
    %307 = vector.shape_cast %306 : vector<32xf32> to vector<32x1xf32>
    %308 = vector.broadcast %307 : vector<32x1xf32> to vector<32x32xf32>
    %309 = arith.subf %305, %308 : vector<32x32xf32>
    %310 = math.exp %309 : vector<32x32xf32>
    %cst_81 = arith.constant dense<0.000000e+00> : vector<32xf32>
    %311 = vector.multi_reduction <add>, %310, %cst_81 [1] : vector<32x32xf32> to vector<32xf32>
    %312 = vector.shape_cast %311 : vector<32xf32> to vector<32x1xf32>
    %313 = tpu.reciprocal %312 {approx = true} : vector<32x1xf32> -> vector<32x1xf32>
    %314 = vector.broadcast %313 : vector<32x1xf32> to vector<32x32xf32>
    %315 = arith.mulf %310, %314 : vector<32x32xf32>
    %316 = vector.extract_strided_slice %256 {offsets = [0, 35], sizes = [32, 1], strides = [1, 1]} : vector<32x36xf32> to vector<32x1xf32>
    %317 = vector.extract_strided_slice %258 {offsets = [3, 0], sizes = [1, 32], strides = [1, 1]} : vector<4x32xf32> to vector<1x32xf32>
    %318 = vector.broadcast %316 : vector<32x1xf32> to vector<32x32xf32>
    %319 = vector.broadcast %317 : vector<1x32xf32> to vector<32x32xf32>
    %320 = arith.addf %318, %319 : vector<32x32xf32>
    %cst_82 = arith.constant 2.000000e-01 : f32
    %321 = vector.broadcast %cst_82 : f32 to vector<32x32xf32>
    %322 = arith.mulf %321, %320 : vector<32x32xf32>
    %323 = arith.maximumf %320, %322 : vector<32x32xf32>
    %324 = arith.addf %323, %0 : vector<32x32xf32>
    %cst_83 = arith.constant dense<0xFF800000> : vector<32xf32>
    %325 = vector.multi_reduction <maximumf>, %324, %cst_83 [1] : vector<32x32xf32> to vector<32xf32>
    %326 = vector.shape_cast %325 : vector<32xf32> to vector<32x1xf32>
    %327 = vector.broadcast %326 : vector<32x1xf32> to vector<32x32xf32>
    %328 = arith.subf %324, %327 : vector<32x32xf32>
    %329 = math.exp %328 : vector<32x32xf32>
    %cst_84 = arith.constant dense<0.000000e+00> : vector<32xf32>
    %330 = vector.multi_reduction <add>, %329, %cst_84 [1] : vector<32x32xf32> to vector<32xf32>
    %331 = vector.shape_cast %330 : vector<32xf32> to vector<32x1xf32>
    %332 = tpu.reciprocal %331 {approx = true} : vector<32x1xf32> -> vector<32x1xf32>
    %333 = vector.broadcast %332 : vector<32x1xf32> to vector<32x32xf32>
    %334 = arith.mulf %329, %333 : vector<32x32xf32>
    %335 = tpu.concatenate %277, %296, %315, %334 in 1 : vector<32x32xf32>, vector<32x32xf32>, vector<32x32xf32>, vector<32x32xf32> -> vector<32x128xf32>
    %336 = tpu.iota {dimensions = array<i32: 1>} : vector<32x32xi32>
    %c0_i32_85 = arith.constant 0 : i32
    %337 = vector.broadcast %c0_i32_85 : i32 to vector<32x32xi32>
    %338 = arith.cmpi sge, %336, %337 : vector<32x32xi32>
    %c8_i32_86 = arith.constant 8 : i32
    %339 = vector.broadcast %c8_i32_86 : i32 to vector<32x32xi32>
    %340 = arith.cmpi slt, %336, %339 : vector<32x32xi32>
    %341 = arith.andi %338, %340 : vector<32x32xi1>
    %cst_87 = arith.constant 0.000000e+00 : f32
    %342 = vector.broadcast %cst_87 : f32 to vector<32x32xf32>
    %343 = arith.select %341, %257, %342 : vector<32x32xi1>, vector<32x32xf32>
    %c8_i32_88 = arith.constant 8 : i32
    %344 = vector.broadcast %c8_i32_88 : i32 to vector<32x32xi32>
    %345 = arith.cmpi sge, %336, %344 : vector<32x32xi32>
    %c16_i32_89 = arith.constant 16 : i32
    %346 = vector.broadcast %c16_i32_89 : i32 to vector<32x32xi32>
    %347 = arith.cmpi slt, %336, %346 : vector<32x32xi32>
    %348 = arith.andi %345, %347 : vector<32x32xi1>
    %cst_90 = arith.constant 0.000000e+00 : f32
    %349 = vector.broadcast %cst_90 : f32 to vector<32x32xf32>
    %350 = arith.select %348, %257, %349 : vector<32x32xi1>, vector<32x32xf32>
    %c16_i32_91 = arith.constant 16 : i32
    %351 = vector.broadcast %c16_i32_91 : i32 to vector<32x32xi32>
    %352 = arith.cmpi sge, %336, %351 : vector<32x32xi32>
    %c24_i32_92 = arith.constant 24 : i32
    %353 = vector.broadcast %c24_i32_92 : i32 to vector<32x32xi32>
    %354 = arith.cmpi slt, %336, %353 : vector<32x32xi32>
    %355 = arith.andi %352, %354 : vector<32x32xi1>
    %cst_93 = arith.constant 0.000000e+00 : f32
    %356 = vector.broadcast %cst_93 : f32 to vector<32x32xf32>
    %357 = arith.select %355, %257, %356 : vector<32x32xi1>, vector<32x32xf32>
    %c24_i32_94 = arith.constant 24 : i32
    %358 = vector.broadcast %c24_i32_94 : i32 to vector<32x32xi32>
    %359 = arith.cmpi sge, %336, %358 : vector<32x32xi32>
    %c32_i32_95 = arith.constant 32 : i32
    %360 = vector.broadcast %c32_i32_95 : i32 to vector<32x32xi32>
    %361 = arith.cmpi slt, %336, %360 : vector<32x32xi32>
    %362 = arith.andi %359, %361 : vector<32x32xi1>
    %cst_96 = arith.constant 0.000000e+00 : f32
    %363 = vector.broadcast %cst_96 : f32 to vector<32x32xf32>
    %364 = arith.select %362, %257, %363 : vector<32x32xi1>, vector<32x32xf32>
    %365 = tpu.concatenate %343, %350, %357, %364 in 0 : vector<32x32xf32>, vector<32x32xf32>, vector<32x32xf32>, vector<32x32xf32> -> vector<128x32xf32>
    %cst_97 = arith.constant dense<0.000000e+00> : vector<32x32xf32>
    %366 = tpu.matmul %335, %365, %cst_97 {dimension_numbers = #tpu.dot_dimension_numbers<[1], [0], [0], [1], [0, 0, 1, 1], [], []>} : vector<32x128xf32>, vector<128x32xf32>, vector<32x32xf32> -> vector<32x32xf32>
    %367 = arith.addf %366, %252 : vector<32x32xf32>
    %368 = vector.broadcast %255 : vector<1x32xf32> to vector<32x32xf32>
    %369 = arith.addf %367, %368 : vector<32x32xf32>
    %370 = vector.extract_strided_slice %369 {offsets = [0, 0], sizes = [32, 8], strides = [1, 1]} : vector<32x32xf32> to vector<32x8xf32>
    %371 = vector.extract_strided_slice %369 {offsets = [0, 8], sizes = [32, 8], strides = [1, 1]} : vector<32x32xf32> to vector<32x8xf32>
    %372 = arith.addf %370, %371 : vector<32x8xf32>
    %373 = vector.extract_strided_slice %369 {offsets = [0, 16], sizes = [32, 8], strides = [1, 1]} : vector<32x32xf32> to vector<32x8xf32>
    %374 = arith.addf %372, %373 : vector<32x8xf32>
    %375 = vector.extract_strided_slice %369 {offsets = [0, 24], sizes = [32, 8], strides = [1, 1]} : vector<32x32xf32> to vector<32x8xf32>
    %376 = arith.addf %374, %375 : vector<32x8xf32>
    %cst_98 = arith.constant 2.500000e-01 : f32
    %377 = vector.broadcast %cst_98 : f32 to vector<32x8xf32>
    %378 = arith.mulf %376, %377 : vector<32x8xf32>
    %c0_99 = arith.constant 0 : index
    %c0_100 = arith.constant 0 : index
    %379 = vector.load %arg5[%c0_99, %c0_100] : memref<32x8xf32, #tpu.memory_space<vmem>>, vector<32x8xf32>
    tpu.vector_store %arg5[%c0_99, %c0_100], %378 {strides = array<i32>} : memref<32x8xf32, #tpu.memory_space<vmem>>, vector<32x8xf32>,
    return
  }
}

</mosaic_0001>

<llo_original>
// kernel: tpu_custom_call.1
$region0: #{tpu_custom_call.1}
  #allocation0 [shape = 'u32[]', space=smem, size = 0x4, offset = 0x4, fixed_abs, tag = 'smem constant byte address 0x4 - core index']
  #allocation1 [shape = 'u32[144,128]{1,0:T(1,128)}', space=vmem, size = 0x12000, scoped, tag = 'internal scratch']
  %s0 = inlined_call_operand.vmem [shape: f32[32,16], index: 0, kind: input, shape index: {}]
  %s1 = inlined_call_operand.hbm [shape: f32[32,32], index: 1, kind: input, shape index: {}]
  %s2 = inlined_call_operand.hbm [shape: f32[24,68], index: 2, kind: input, shape index: {}]
  %s3 = inlined_call_operand.vmem [shape: f32[40,36], index: 3, kind: input, shape index: {}]
  %s4 = inlined_call_operand.hbm [shape: f32[40,36], index: 4, kind: input, shape index: {}]
  %s5 = inlined_call_operand.vmem [shape: f32[32,8], index: 5, kind: output, shape index: {}]
  %s6 = sld [smem:[#allocation0]]
  $region42: #{tpu_custom_call.1} parent=0
    _
  %s8 = ssub.s32 1, %s6
  %s9 = scalar_select 0, %s8, %s6
  $region1: #{tpu_custom_call.1} parent=0
    #allocation2 [shape = 'u8[16384]{0}', space=vmem, size = 0x4000, scoped, tag = 'input window, operand 1, single buffered']
    #allocation3 [shape = 's32[1]{0}', space=sflag, size = 0x4, scoped, tag = 'scoped memory for tpu_custom_call.1']
    #allocation4 [shape = 'u8[12288]{0}', space=vmem, size = 0x3000, scoped, tag = 'input window, operand 2, single buffered']
    #allocation5 [shape = 's32[1]{0}', space=sflag, size = 0x4, scoped, tag = 'scoped memory for tpu_custom_call.1']
    #allocation6 [shape = 'u8[20480]{0}', space=vmem, size = 0x5000, scoped, tag = 'input window, operand 4, single buffered']
    %10 = vsyncpa [#allocation3], 0
    %11 = vsyncpa [#allocation5], 0
    // Predicated region
    $region2: #{tpu_custom_call.1} parent=1 // pred_check
      _
    $region3: #{tpu_custom_call.1} parent=1 // pred_check_branch
      %13 = sbr.rel (0) target = $region5
    $region4: #{tpu_custom_call.1} parent=1 // pred_region
      _
    $region5: #{tpu_custom_call.1} parent=1 // pred_fallthru
      _
    // Predicated region
    $region6: #{tpu_custom_call.1} parent=1 // pred_check
      _
    $region7: #{tpu_custom_call.1} parent=1 // pred_check_branch
      %15 = sbr.rel (0) target = $region9
    $region8: #{tpu_custom_call.1} parent=1 // pred_region
      %s17 = ssub.s32 512, 512
      %18 = vsyncadd [#allocation3], %s17
      %s19 = sshll.u32 [#allocation2], 4
      %s20 = int_to_ptr.vmem [resolvable:$true] %s19
      %25 = dma.hbm_to_vmem [thread:$0]  %s1, 512, %s20, [#allocation3], 128, 128, 8
    $region9: #{tpu_custom_call.1} parent=1 // pred_fallthru
      _
    // Predicated region
    $region10: #{tpu_custom_call.1} parent=1 // pred_check
      _
    $region11: #{tpu_custom_call.1} parent=1 // pred_check_branch
      %27 = sbr.rel (0) target = $region13
    $region12: #{tpu_custom_call.1} parent=1 // pred_region
      %s29 = ssub.s32 384, 384
      %30 = vsyncadd [#allocation5], %s29
      %s31 = sshll.u32 [#allocation4], 4
      %s32 = int_to_ptr.vmem [resolvable:$true] %s31
      %37 = dma.hbm_to_vmem [thread:$0]  %s2, 384, %s32, [#allocation5], 128, 128, 8
    $region13: #{tpu_custom_call.1} parent=1 // pred_fallthru
      _
    // Predicated region
    $region14: #{tpu_custom_call.1} parent=1 // pred_check
      _
    $region15: #{tpu_custom_call.1} parent=1 // pred_check_branch
      %39 = sbr.rel (0) target = $region17
    $region16: #{tpu_custom_call.1} parent=1 // pred_region
      _
    $region17: #{tpu_custom_call.1} parent=1 // pred_fallthru
      _
    // Predicated region
    $region18: #{tpu_custom_call.1} parent=1 // pred_check
      _
    $region19: #{tpu_custom_call.1} parent=1 // pred_check_branch
      %41 = sbr.rel (0) target = $region21
    $region20: #{tpu_custom_call.1} parent=1 // pred_region
      %s43 = ssub.s32 640, 640
      %44 = vsyncadd [#allocation5], %s43
      %s45 = sshll.u32 [#allocation6], 4
      %s46 = int_to_ptr.vmem [resolvable:$true] %s45
      %51 = dma.hbm_to_vmem [thread:$0]  %s4, 640, %s46, [#allocation5], 128, 128, 8
    $region21: #{tpu_custom_call.1} parent=1 // pred_fallthru
      _
    // Predicated region
    $region22: #{tpu_custom_call.1} parent=1 // pred_check
      _
    $region23: #{tpu_custom_call.1} parent=1 // pred_check_branch
      %53 = sbr.rel (0) target = $region25
    $region24: #{tpu_custom_call.1} parent=1 // pred_region
      %54 = dma.done [#allocation3], 512
    $region25: #{tpu_custom_call.1} parent=1 // pred_fallthru
      _
    // Predicated region
    $region26: #{tpu_custom_call.1} parent=1 // pred_check
      _
    $region27: #{tpu_custom_call.1} parent=1 // pred_check_branch
      %56 = sbr.rel (0) target = $region29
    $region28: #{tpu_custom_call.1} parent=1 // pred_region
      %57 = dma.done [#allocation5], 384
    $region29: #{tpu_custom_call.1} parent=1 // pred_fallthru
      _
    // Predicated region
    $region30: #{tpu_custom_call.1} parent=1 // pred_check
      _
    $region31: #{tpu_custom_call.1} parent=1 // pred_check_branch
      %59 = sbr.rel (0) target = $region33
    $region32: #{tpu_custom_call.1} parent=1 // pred_region
      %60 = dma.done [#allocation5], 640
    $region33: #{tpu_custom_call.1} parent=1 // pred_fallthru
      _
    %v61 = vld [vmem:[#allocation2] sm:$0xff]
    %v62 = vld [vmem:[#allocation2 + $0x8] sm:$0xff]
    %v63 = vld [vmem:[#allocation2 + $0x10] sm:$0xff]
    %v64 = vld [vmem:[#allocation2 + $0x18] sm:$0xff]
    %v65 = vld [vmem:[%s0] sm:$0xff]
    %v66 = vld [vmem:[%s0 + $0x8] sm:$0xff]
    %v67 = vld [vmem:[%s0 + $0x10] sm:$0xff]
    %v68 = vld [vmem:[%s0 + $0x18] sm:$0xff]
    %v69 = vld [vmem:[#allocation4] sm:$0xff]
    %v70 = vld [vmem:[#allocation4 + $0x8] sm:$0xff]
    %v71 = vld [vmem:[#allocation4 + $0x10] sm:$0xf]
    %v72 = vld [vmem:[#allocation4 + $0x14] sm:$0x1]
    %vm73 = vcmask 130048
    %v75 = vsel %vm73, %v65, 0
    %v78 = vsel %vm73, %v66, 0
    %v81 = vsel %vm73, %v67, 0
    %v84 = vsel %vm73, %v68, 0
    %86 = vmatprep.subr.mxu0 0.0
    %87 = vmatpush1.msra.mxu0 0.0
    %88 = vmatprep.subr.mxu0 0.0
    %89 = vmatpush1.msra.mxu0 0.0
    %90 = vmatprep.subr.mxu0 0.0
    %91 = vmatpush1.msra.mxu0 0.0
    %92 = vmatprep.subr.mxu0 0.0
    %93 = vmatpush1.msra.mxu0 0.0
    %94 = vmatprep.subr.mxu0 0.0
    %95 = vmatpush1.msra.mxu0 0.0
    %96 = vmatprep.subr.mxu0 0.0
    %97 = vmatpush1.msra.mxu0 0.0
    %98 = vmatprep.subr.mxu0 0.0
    %99 = vmatpush1.msra.mxu0 0.0
    %100 = vmatprep.subr.mxu0 0.0
    %101 = vmatpush1.msra.mxu0 0.0
    %102 = vmatprep.subr.mxu0 0.0
    %103 = vmatpush1.msra.mxu0 0.0
    %104 = vmatprep.subr.mxu0 0.0
    %105 = vmatpush1.msra.mxu0 0.0
    %106 = vmatprep.subr.mxu0 0.0
    %107 = vmatpush1.msra.mxu0 0.0
    %108 = vmatprep.subr.mxu0 0.0
    %109 = vmatpush1.msra.mxu0 0.0
    %110 = vmatprep.subr.mxu0 0.0
    %111 = vmatpush1.msra.mxu0 0.0
    %112 = vmatprep.subr.mxu0 0.0
    %113 = vmatpush1.msra.mxu0 0.0
    %114 = vmatprep.subr.mxu0 0.0
    %115 = vmatpush1.msra.mxu0 %v70
    %116 = vmatprep.subr.mxu0 0.0
    %117 = vmatpush1.msra.mxu0 %v69
    %118 = vmatprep.subr.mxu0 0.0
    %119 = vmatpush2.msra.mxu0 0.0
    %120 = vmatprep.subr.mxu0 0.0
    %121 = vmatpush2.msra.mxu0 0.0
    %122 = vmatprep.subr.mxu0 0.0
    %123 = vmatpush2.msra.mxu0 0.0
    %124 = vmatprep.subr.mxu0 0.0
    %125 = vmatpush2.msra.mxu0 0.0
    %126 = vmatprep.subr.mxu0 0.0
    %127 = vmatpush2.msra.mxu0 0.0
    %128 = vmatprep.subr.mxu0 0.0
    %129 = vmatpush2.msra.mxu0 0.0
    %130 = vmatprep.subr.mxu0 0.0
    %131 = vmatpush2.msra.mxu0 0.0
    %132 = vmatprep.subr.mxu0 0.0
    %133 = vmatpush2.msra.mxu0 0.0
    %134 = vmatprep.subr.mxu0 0.0
    %135 = vmatpush2.msra.mxu0 0.0
    %136 = vmatprep.subr.mxu0 0.0
    %137 = vmatpush2.msra.mxu0 0.0
    %138 = vmatprep.subr.mxu0 0.0
    %139 = vmatpush2.msra.mxu0 0.0
    %140 = vmatprep.subr.mxu0 0.0
    %141 = vmatpush2.msra.mxu0 0.0
    %142 = vmatprep.subr.mxu0 0.0
    %143 = vmatpush2.msra.mxu0 0.0
    %144 = vmatprep.subr.mxu0 0.0
    %145 = vmatpush2.msra.mxu0 0.0
    %146 = vmatprep.subr.mxu0 0.0
    %147 = vmatpush2.msra.mxu0 0.0
    %148 = vmatprep.subr.mxu0 0.0
    %149 = vmatpush2.msra.mxu0 0.0
    %150 = vmatprep.mubr.f32.mxu0 0.0
    %151 = vmatmul.mubr.f32.gmra.mxu0 %v75
    %v152 = vpop.f32.mrf.mxu0
    %v153 = vadd.f32 0.0, %v152
    %v154 = vpop.f32.mrf.mxu0
    %155 = vmatprep.mubr.f32.mxu0 0.0
    %156 = vmatmul.mubr.f32.gmra.mxu0 %v78
    %v157 = vpop.f32.mrf.mxu0
    %v158 = vadd.f32 0.0, %v157
    %v159 = vpop.f32.mrf.mxu0
    %160 = vmatprep.mubr.f32.mxu0 0.0
    %161 = vmatmul.mubr.f32.gmra.mxu0 %v81
    %v162 = vpop.f32.mrf.mxu0
    %v163 = vadd.f32 0.0, %v162
    %v164 = vpop.f32.mrf.mxu0
    %165 = vmatprep.mubr.f32.mxu0 0.0
    %166 = vmatmul.mubr.f32.gmra.mxu0 %v84
    %v167 = vpop.f32.mrf.mxu0
    %v168 = vadd.f32 0.0, %v167
    %v169 = vpop.f32.mrf.mxu0
    %170 = vdwg.mxu0
    %v172 = vsel %vm73, %v71, 0
    %174 = vmatprep.subr.mxu0 0.0
    %175 = vmatpush1.xpose.msra.mxu0 0.0
    %176 = vmatprep.subr.mxu0 0.0
    %177 = vmatpush1.xpose.msra.mxu0 0.0
    %178 = vmatprep.subr.mxu0 0.0
    %179 = vmatpush1.xpose.msra.mxu0 0.0
    %180 = vmatprep.subr.mxu0 0.0
    %181 = vmatpush1.xpose.msra.mxu0 0.0
    %182 = vmatprep.subr.mxu0 0.0
    %183 = vmatpush1.xpose.msra.mxu0 0.0
    %184 = vmatprep.subr.mxu0 0.0
    %185 = vmatpush1.xpose.msra.mxu0 0.0
    %186 = vmatprep.subr.mxu0 0.0
    %187 = vmatpush1.xpose.msra.mxu0 0.0
    %188 = vmatprep.subr.mxu0 0.0
    %189 = vmatpush1.xpose.msra.mxu0 0.0
    %190 = vmatprep.subr.mxu0 0.0
    %191 = vmatpush1.xpose.msra.mxu0 0.0
    %192 = vmatprep.subr.mxu0 0.0
    %193 = vmatpush1.xpose.msra.mxu0 0.0
    %194 = vmatprep.subr.mxu0 0.0
    %195 = vmatpush1.xpose.msra.mxu0 0.0
    %196 = vmatprep.subr.mxu0 0.0
    %197 = vmatpush1.xpose.msra.mxu0 0.0
    %198 = vmatprep.subr.mxu0 0.0
    %199 = vmatpush1.xpose.msra.mxu0 %v84
    %200 = vmatprep.subr.mxu0 0.0
    %201 = vmatpush1.xpose.msra.mxu0 %v81
    %202 = vmatprep.subr.mxu0 0.0
    %203 = vmatpush1.xpose.msra.mxu0 %v78
    %204 = vmatprep.subr.mxu0 0.0
    %205 = vmatpush1.xpose.msra.mxu0 %v75
    %206 = vmatprep.subr.mxu0 0.0
    %207 = vmatpush2.xpose.msra.mxu0 0.0
    %208 = vmatprep.subr.mxu0 0.0
    %209 = vmatpush2.xpose.msra.mxu0 0.0
    %210 = vmatprep.subr.mxu0 0.0
    %211 = vmatpush2.xpose.msra.mxu0 0.0
    %212 = vmatprep.subr.mxu0 0.0
    %213 = vmatpush2.xpose.msra.mxu0 0.0
    %214 = vmatprep.subr.mxu0 0.0
    %215 = vmatpush2.xpose.msra.mxu0 0.0
    %216 = vmatprep.subr.mxu0 0.0
    %217 = vmatpush2.xpose.msra.mxu0 0.0
    %218 = vmatprep.subr.mxu0 0.0
    %219 = vmatpush2.xpose.msra.mxu0 0.0
    %220 = vmatprep.subr.mxu0 0.0
    %221 = vmatpush2.xpose.msra.mxu0 0.0
    %222 = vmatprep.subr.mxu0 0.0
    %223 = vmatpush2.xpose.msra.mxu0 0.0
    %224 = vmatprep.subr.mxu0 0.0
    %225 = vmatpush2.xpose.msra.mxu0 0.0
    %226 = vmatprep.subr.mxu0 0.0
    %227 = vmatpush2.xpose.msra.mxu0 0.0
    %228 = vmatprep.subr.mxu0 0.0
    %229 = vmatpush2.xpose.msra.mxu0 0.0
    %230 = vmatprep.subr.mxu0 0.0
    %231 = vmatpush2.xpose.msra.mxu0 0.0
    %232 = vmatprep.subr.mxu0 0.0
    %233 = vmatpush2.xpose.msra.mxu0 0.0
    %234 = vmatprep.subr.mxu0 0.0
    %235 = vmatpush2.xpose.msra.mxu0 0.0
    %236 = vmatprep.subr.mxu0 0.0
    %237 = vmatpush2.xpose.msra.mxu0 0.0
    %238 = vmatprep.mubr.f32.mxu0 0.0
    %239 = vmatmul.mubr.f32.gmra.mxu0 %v172
    %v240 = vpop.f32.mrf.mxu0
    %v241 = vadd.f32 0.0, %v240
    %v242 = vpop.f32.mrf.mxu0
    %243 = vdwg.mxu0
    %245 = vset.pattern.permute.xlu0 64
    %246 = vperm.xlu0 %245, %v153
    %v247 = vpop.permute.xlu0 %246
    %250 = vset.pattern.permute.xlu0 64
    %251 = vperm.xlu0 %250, %v158
    %v252 = vpop.permute.xlu0 %251
    %255 = vset.pattern.permute.xlu0 64
    %256 = vperm.xlu0 %255, %v163
    %v257 = vpop.permute.xlu0 %256
    %260 = vset.pattern.permute.xlu0 64
    %261 = vperm.xlu0 %260, %v168
    %v262 = vpop.permute.xlu0 %261
    %v264 = vlaneseq
    %v265 = vshrl.u32 %v264, 7
    %v266 = vsub.s32 0, %v265
    %v267 = vrot.slane %v241, %v266
    %v268 = vadd.f32 %v247, %v267
    %v269 = vadd.f32 %v252, %v267
    %v270 = vadd.f32 %v257, %v267
    %v271 = vadd.f32 %v262, %v267
    %v272 = vmul.f32 %v268, 0.2
    %v273 = vmul.f32 %v269, 0.2
    %v274 = vmul.f32 %v270, 0.2
    %v275 = vmul.f32 %v271, 0.2
    %v276 = vmax.f32 %v268, %v272
    %v277 = vmax.f32 %v269, %v273
    %v278 = vmax.f32 %v270, %v274
    %v279 = vmax.f32 %v271, %v275
    %v280 = vadd.f32 %v276, %v61
    %v281 = vadd.f32 %v277, %v62
    %v282 = vadd.f32 %v278, %v63
    %v283 = vadd.f32 %v279, %v64
    %vm284 = vcmask 261120
    %v285 = vsel %vm284, %v280, -inf
    %286 = vmax.xlane.f32.xlu0 %v285
    %v287 = vpop.xlane.xlu0 %286
    %v288 = vsel %vm284, %v281, -inf
    %289 = vmax.xlane.f32.xlu0 %v288
    %v290 = vpop.xlane.xlu0 %289
    %v291 = vsel %vm284, %v282, -inf
    %292 = vmax.xlane.f32.xlu0 %v291
    %v293 = vpop.xlane.xlu0 %292
    %v294 = vsel %vm284, %v283, -inf
    %295 = vmax.xlane.f32.xlu0 %v294
    %v296 = vpop.xlane.xlu0 %295
    %v297 = vsub.f32 %v280, %v287
    %v298 = vsub.f32 %v281, %v290
    %v299 = vsub.f32 %v282, %v293
    %v300 = vsub.f32 %v283, %v296
    %v301 = vmul.f32 %v297, 1.442695
    %v302 = vpow.pop %v301
    %v303 = vmul.f32 %v298, 1.442695
    %v304 = vpow.pop %v303
    %v305 = vmul.f32 %v299, 1.442695
    %v306 = vpow.pop %v305
    %v307 = vmul.f32 %v300, 1.442695
    %v308 = vpow.pop %v307
    %v309 = vsel %vm284, %v302, 0.0
    %310 = vadd.xlane.f32.xlu0 %v309
    %v311 = vpop.xlane.xlu0 %310
    %v312 = vsel %vm284, %v304, 0.0
    %313 = vadd.xlane.f32.xlu0 %v312
    %v314 = vpop.xlane.xlu0 %313
    %v315 = vsel %vm284, %v306, 0.0
    %316 = vadd.xlane.f32.xlu0 %v315
    %v317 = vpop.xlane.xlu0 %316
    %v318 = vsel %vm284, %v308, 0.0
    %319 = vadd.xlane.f32.xlu0 %v318
    %v320 = vpop.xlane.xlu0 %319
    %v321 = vrcp.pop %v311
    %v322 = vrcp.pop %v314
    %v323 = vrcp.pop %v317
    %v324 = vrcp.pop %v320
    %v325 = vmul.f32 %v302, %v321
    %v326 = vmul.f32 %v304, %v322
    %v327 = vmul.f32 %v306, %v323
    %v328 = vmul.f32 %v308, %v324
    %329 = vset.pattern.permute.xlu0 65
    %330 = vperm.xlu0 %329, %v153
    %v331 = vpop.permute.xlu0 %330
    %333 = vset.pattern.permute.xlu0 65
    %334 = vperm.xlu0 %333, %v158
    %v335 = vpop.permute.xlu0 %334
    %337 = vset.pattern.permute.xlu0 65
    %338 = vperm.xlu0 %337, %v163
    %v339 = vpop.permute.xlu0 %338
    %341 = vset.pattern.permute.xlu0 65
    %342 = vperm.xlu0 %341, %v168
    %v343 = vpop.permute.xlu0 %342
    %v345 = vlaneseq
    %v346 = vshrl.u32 %v345, 7
    %v347 = vsub.s32 1, %v346
    %v348 = vrot.slane %v241, %v347
    %v349 = vadd.f32 %v331, %v348
    %v350 = vadd.f32 %v335, %v348
    %v351 = vadd.f32 %v339, %v348
    %v352 = vadd.f32 %v343, %v348
    %v353 = vmul.f32 %v349, 0.2
    %v354 = vmul.f32 %v350, 0.2
    %v355 = vmul.f32 %v351, 0.2
    %v356 = vmul.f32 %v352, 0.2
    %v357 = vmax.f32 %v349, %v353
    %v358 = vmax.f32 %v350, %v354
    %v359 = vmax.f32 %v351, %v355
    %v360 = vmax.f32 %v352, %v356
    %v361 = vadd.f32 %v357, %v61
    %v362 = vadd.f32 %v358, %v62
    %v363 = vadd.f32 %v359, %v63
    %v364 = vadd.f32 %v360, %v64
    %v365 = vsel %vm284, %v361, -inf
    %366 = vmax.xlane.f32.xlu0 %v365
    %v367 = vpop.xlane.xlu0 %366
    %v368 = vsel %vm284, %v362, -inf
    %369 = vmax.xlane.f32.xlu0 %v368
    %v370 = vpop.xlane.xlu0 %369
    %v371 = vsel %vm284, %v363, -inf
    %372 = vmax.xlane.f32.xlu0 %v371
    %v373 = vpop.xlane.xlu0 %372
    %v374 = vsel %vm284, %v364, -inf
    %375 = vmax.xlane.f32.xlu0 %v374
    %v376 = vpop.xlane.xlu0 %375
    %v377 = vsub.f32 %v361, %v367
    %v378 = vsub.f32 %v362, %v370
    %v379 = vsub.f32 %v363, %v373
    %v380 = vsub.f32 %v364, %v376
    %v381 = vmul.f32 %v377, 1.442695
    %v382 = vpow.pop %v381
    %v383 = vmul.f32 %v378, 1.442695
    %v384 = vpow.pop %v383
    %v385 = vmul.f32 %v379, 1.442695
    %v386 = vpow.pop %v385
    %v387 = vmul.f32 %v380, 1.442695
    %v388 = vpow.pop %v387
    %v389 = vsel %vm284, %v382, 0.0
    %390 = vadd.xlane.f32.xlu0 %v389
    %v391 = vpop.xlane.xlu0 %390
    %v392 = vsel %vm284, %v384, 0.0
    %393 = vadd.xlane.f32.xlu0 %v392
    %v394 = vpop.xlane.xlu0 %393
    %v395 = vsel %vm284, %v386, 0.0
    %396 = vadd.xlane.f32.xlu0 %v395
    %v397 = vpop.xlane.xlu0 %396
    %v398 = vsel %vm284, %v388, 0.0
    %399 = vadd.xlane.f32.xlu0 %v398
    %v400 = vpop.xlane.xlu0 %399
    %v401 = vrcp.pop %v391
    %v402 = vrcp.pop %v394
    %v403 = vrcp.pop %v397
    %v404 = vrcp.pop %v400
    %v405 = vmul.f32 %v382, %v401
    %v406 = vmul.f32 %v384, %v402
    %v407 = vmul.f32 %v386, %v403
    %v408 = vmul.f32 %v388, %v404
    %409 = vset.pattern.permute.xlu0 66
    %410 = vperm.xlu0 %409, %v153
    %v411 = vpop.permute.xlu0 %410
    %413 = vset.pattern.permute.xlu0 66
    %414 = vperm.xlu0 %413, %v158
    %v415 = vpop.permute.xlu0 %414
    %417 = vset.pattern.permute.xlu0 66
    %418 = vperm.xlu0 %417, %v163
    %v419 = vpop.permute.xlu0 %418
    %421 = vset.pattern.permute.xlu0 66
    %422 = vperm.xlu0 %421, %v168
    %v423 = vpop.permute.xlu0 %422
    %v425 = vlaneseq
    %v426 = vshrl.u32 %v425, 7
    %v427 = vsub.s32 2, %v426
    %v428 = vrot.slane %v241, %v427
    %v429 = vadd.f32 %v411, %v428
    %v430 = vadd.f32 %v415, %v428
    %v431 = vadd.f32 %v419, %v428
    %v432 = vadd.f32 %v423, %v428
    %v433 = vmul.f32 %v429, 0.2
    %v434 = vmul.f32 %v430, 0.2
    %v435 = vmul.f32 %v431, 0.2
    %v436 = vmul.f32 %v432, 0.2
    %v437 = vmax.f32 %v429, %v433
    %v438 = vmax.f32 %v430, %v434
    %v439 = vmax.f32 %v431, %v435
    %v440 = vmax.f32 %v432, %v436
    %v441 = vadd.f32 %v437, %v61
    %v442 = vadd.f32 %v438, %v62
    %v443 = vadd.f32 %v439, %v63
    %v444 = vadd.f32 %v440, %v64
    %v445 = vsel %vm284, %v441, -inf
    %446 = vmax.xlane.f32.xlu0 %v445
    %v447 = vpop.xlane.xlu0 %446
    %v448 = vsel %vm284, %v442, -inf
    %449 = vmax.xlane.f32.xlu0 %v448
    %v450 = vpop.xlane.xlu0 %449
    %v451 = vsel %vm284, %v443, -inf
    %452 = vmax.xlane.f32.xlu0 %v451
    %v453 = vpop.xlane.xlu0 %452
    %v454 = vsel %vm284, %v444, -inf
    %455 = vmax.xlane.f32.xlu0 %v454
    %v456 = vpop.xlane.xlu0 %455
    %v457 = vsub.f32 %v441, %v447
    %v458 = vsub.f32 %v442, %v450
    %v459 = vsub.f32 %v443, %v453
    %v460 = vsub.f32 %v444, %v456
    %v461 = vmul.f32 %v457, 1.442695
    %v462 = vpow.pop %v461
    %v463 = vmul.f32 %v458, 1.442695
    %v464 = vpow.pop %v463
    %v465 = vmul.f32 %v459, 1.442695
    %v466 = vpow.pop %v465
    %v467 = vmul.f32 %v460, 1.442695
    %v468 = vpow.pop %v467
    %v469 = vsel %vm284, %v462, 0.0
    %470 = vadd.xlane.f32.xlu0 %v469
    %v471 = vpop.xlane.xlu0 %470
    %v472 = vsel %vm284, %v464, 0.0
    %473 = vadd.xlane.f32.xlu0 %v472
    %v474 = vpop.xlane.xlu0 %473
    %v475 = vsel %vm284, %v466, 0.0
    %476 = vadd.xlane.f32.xlu0 %v475
    %v477 = vpop.xlane.xlu0 %476
    %v478 = vsel %vm284, %v468, 0.0
    %479 = vadd.xlane.f32.xlu0 %v478
    %v480 = vpop.xlane.xlu0 %479
    %v481 = vrcp.pop %v471
    %v482 = vrcp.pop %v474
    %v483 = vrcp.pop %v477
    %v484 = vrcp.pop %v480
    %v485 = vmul.f32 %v462, %v481
    %v486 = vmul.f32 %v464, %v482
    %v487 = vmul.f32 %v466, %v483
    %v488 = vmul.f32 %v468, %v484
    %489 = vset.pattern.permute.xlu0 67
    %490 = vperm.xlu0 %489, %v153
    %v491 = vpop.permute.xlu0 %490
    %493 = vset.pattern.permute.xlu0 67
    %494 = vperm.xlu0 %493, %v158
    %v495 = vpop.permute.xlu0 %494
    %497 = vset.pattern.permute.xlu0 67
    %498 = vperm.xlu0 %497, %v163
    %v499 = vpop.permute.xlu0 %498
    %501 = vset.pattern.permute.xlu0 67
    %502 = vperm.xlu0 %501, %v168
    %v503 = vpop.permute.xlu0 %502
    %v505 = vlaneseq
    %v506 = vshrl.u32 %v505, 7
    %v507 = vsub.s32 3, %v506
    %v508 = vrot.slane %v241, %v507
    %v509 = vadd.f32 %v491, %v508
    %v510 = vadd.f32 %v495, %v508
    %v511 = vadd.f32 %v499, %v508
    %v512 = vadd.f32 %v503, %v508
    %v513 = vmul.f32 %v509, 0.2
    %v514 = vmul.f32 %v510, 0.2
    %v515 = vmul.f32 %v511, 0.2
    %v516 = vmul.f32 %v512, 0.2
    %v517 = vmax.f32 %v509, %v513
    %v518 = vmax.f32 %v510, %v514
    %v519 = vmax.f32 %v511, %v515
    %v520 = vmax.f32 %v512, %v516
    %v521 = vadd.f32 %v517, %v61
    %v522 = vadd.f32 %v518, %v62
    %v523 = vadd.f32 %v519, %v63
    %v524 = vadd.f32 %v520, %v64
    %v525 = vsel %vm284, %v521, -inf
    %526 = vmax.xlane.f32.xlu0 %v525
    %v527 = vpop.xlane.xlu0 %526
    %v528 = vsel %vm284, %v522, -inf
    %529 = vmax.xlane.f32.xlu0 %v528
    %v530 = vpop.xlane.xlu0 %529
    %v531 = vsel %vm284, %v523, -inf
    %532 = vmax.xlane.f32.xlu0 %v531
    %v533 = vpop.xlane.xlu0 %532
    %v534 = vsel %vm284, %v524, -inf
    %535 = vmax.xlane.f32.xlu0 %v534
    %v536 = vpop.xlane.xlu0 %535
    %v537 = vsub.f32 %v521, %v527
    %v538 = vsub.f32 %v522, %v530
    %v539 = vsub.f32 %v523, %v533
    %v540 = vsub.f32 %v524, %v536
    %v541 = vmul.f32 %v537, 1.442695
    %v542 = vpow.pop %v541
    %v543 = vmul.f32 %v538, 1.442695
    %v544 = vpow.pop %v543
    %v545 = vmul.f32 %v539, 1.442695
    %v546 = vpow.pop %v545
    %v547 = vmul.f32 %v540, 1.442695
    %v548 = vpow.pop %v547
    %v549 = vsel %vm284, %v542, 0.0
    %550 = vadd.xlane.f32.xlu0 %v549
    %v551 = vpop.xlane.xlu0 %550
    %v552 = vsel %vm284, %v544, 0.0
    %553 = vadd.xlane.f32.xlu0 %v552
    %v554 = vpop.xlane.xlu0 %553
    %v555 = vsel %vm284, %v546, 0.0
    %556 = vadd.xlane.f32.xlu0 %v555
    %v557 = vpop.xlane.xlu0 %556
    %v558 = vsel %vm284, %v548, 0.0
    %559 = vadd.xlane.f32.xlu0 %v558
    %v560 = vpop.xlane.xlu0 %559
    %v561 = vrcp.pop %v551
    %v562 = vrcp.pop %v554
    %v563 = vrcp.pop %v557
    %v564 = vrcp.pop %v560
    %v565 = vmul.f32 %v542, %v561
    %v566 = vmul.f32 %v544, %v562
    %v567 = vmul.f32 %v546, %v563
    %v568 = vmul.f32 %v548, %v564
    %573 = vrot.lane.b32.xlu0 %v405, 32
    %v574 = vpop.permute.xlu0 %573
    %575 = vrot.lane.b32.xlu0 %v406, 32
    %v576 = vpop.permute.xlu0 %575
    %577 = vrot.lane.b32.xlu0 %v407, 32
    %v578 = vpop.permute.xlu0 %577
    %579 = vrot.lane.b32.xlu0 %v408, 32
    %v580 = vpop.permute.xlu0 %579
    %589 = vrot.lane.b32.xlu0 %v485, 64
    %v590 = vpop.permute.xlu0 %589
    %591 = vrot.lane.b32.xlu0 %v486, 64
    %v592 = vpop.permute.xlu0 %591
    %593 = vrot.lane.b32.xlu0 %v487, 64
    %v594 = vpop.permute.xlu0 %593
    %595 = vrot.lane.b32.xlu0 %v488, 64
    %v596 = vpop.permute.xlu0 %595
    %605 = vrot.lane.b32.xlu0 %v565, 96
    %v606 = vpop.permute.xlu0 %605
    %607 = vrot.lane.b32.xlu0 %v566, 96
    %v608 = vpop.permute.xlu0 %607
    %609 = vrot.lane.b32.xlu0 %v567, 96
    %v610 = vpop.permute.xlu0 %609
    %611 = vrot.lane.b32.xlu0 %v568, 96
    %v612 = vpop.permute.xlu0 %611
    %v617 = vsel %vm284, %v325, %v574
    %v618 = vsel %vm284, %v326, %v576
    %v619 = vsel %vm284, %v327, %v578
    %v620 = vsel %vm284, %v328, %v580
    %vm621 = vcmask 523264
    %v622 = vsel %vm621, %v617, %v590
    %v623 = vsel %vm621, %v618, %v592
    %v624 = vsel %vm621, %v619, %v594
    %v625 = vsel %vm621, %v620, %v596
    %vm626 = vcmask 785408
    %v627 = vsel %vm626, %v622, %v606
    %v628 = vsel %vm626, %v623, %v608
    %v629 = vsel %vm626, %v624, %v610
    %v630 = vsel %vm626, %v625, %v612
    %v631 = vlaneseq
    %v632 = vand.u32 %v631, 127
    %vm633 = vcmp.ge.s32.totalorder %v632, 0
    %vm634 = vcmp.lt.s32.totalorder %v632, 8
    %vm635 = vmand %vm633, %vm634
    %v636 = vsel %vm635, %v153, 0.0
    %v637 = vsel %vm635, %v158, 0.0
    %v638 = vsel %vm635, %v163, 0.0
    %v639 = vsel %vm635, %v168, 0.0
    %vm640 = vcmp.ge.s32.totalorder %v632, 8
    %vm641 = vcmp.lt.s32.totalorder %v632, 16
    %vm642 = vmand %vm640, %vm641
    %v643 = vsel %vm642, %v153, 0.0
    %v644 = vsel %vm642, %v158, 0.0
    %v645 = vsel %vm642, %v163, 0.0
    %v646 = vsel %vm642, %v168, 0.0
    %vm647 = vcmp.ge.s32.totalorder %v632, 16
    %vm648 = vcmp.lt.s32.totalorder %v632, 24
    %vm649 = vmand %vm647, %vm648
    %v650 = vsel %vm649, %v153, 0.0
    %v651 = vsel %vm649, %v158, 0.0
    %v652 = vsel %vm649, %v163, 0.0
    %v653 = vsel %vm649, %v168, 0.0
    %vm654 = vcmp.ge.s32.totalorder %v632, 24
    %vm655 = vcmp.lt.s32.totalorder %v632, 32
    %vm656 = vmand %vm654, %vm655
    %v657 = vsel %vm656, %v153, 0.0
    %v658 = vsel %vm656, %v158, 0.0
    %v659 = vsel %vm656, %v163, 0.0
    %v660 = vsel %vm656, %v168, 0.0
    %661 = vrot.lane.b32.xlu0 %v153, 96
    %v662 = vpop.permute.xlu0 %661
    %663 = vrot.lane.b32.xlu0 %v158, 96
    %v664 = vpop.permute.xlu0 %663
    %665 = vrot.lane.b32.xlu0 %v163, 96
    %v666 = vpop.permute.xlu0 %665
    %667 = vrot.lane.b32.xlu0 %v168, 96
    %v668 = vpop.permute.xlu0 %667
    %673 = vmatprep.subr.mxu0 0.0
    %674 = vmatpush1.msra.mxu0 %v660
    %675 = vmatprep.subr.mxu0 0.0
    %676 = vmatpush1.msra.mxu0 %v659
    %677 = vmatprep.subr.mxu0 0.0
    %678 = vmatpush1.msra.mxu0 %v658
    %679 = vmatprep.subr.mxu0 0.0
    %680 = vmatpush1.msra.mxu0 %v657
    %681 = vmatprep.subr.mxu0 0.0
    %682 = vmatpush1.msra.mxu0 %v653
    %683 = vmatprep.subr.mxu0 0.0
    %684 = vmatpush1.msra.mxu0 %v652
    %685 = vmatprep.subr.mxu0 0.0
    %686 = vmatpush1.msra.mxu0 %v651
    %687 = vmatprep.subr.mxu0 0.0
    %688 = vmatpush1.msra.mxu0 %v650
    %689 = vmatprep.subr.mxu0 0.0
    %690 = vmatpush1.msra.mxu0 %v646
    %691 = vmatprep.subr.mxu0 0.0
    %692 = vmatpush1.msra.mxu0 %v645
    %693 = vmatprep.subr.mxu0 0.0
    %694 = vmatpush1.msra.mxu0 %v644
    %695 = vmatprep.subr.mxu0 0.0
    %696 = vmatpush1.msra.mxu0 %v643
    %697 = vmatprep.subr.mxu0 0.0
    %698 = vmatpush1.msra.mxu0 %v639
    %699 = vmatprep.subr.mxu0 0.0
    %700 = vmatpush1.msra.mxu0 %v638
    %701 = vmatprep.subr.mxu0 0.0
    %702 = vmatpush1.msra.mxu0 %v637
    %703 = vmatprep.subr.mxu0 0.0
    %704 = vmatpush1.msra.mxu0 %v636
    %705 = vmatprep.subr.mxu0 0.0
    %706 = vmatpush2.msra.mxu0 0.0
    %707 = vmatprep.subr.mxu0 0.0
    %708 = vmatpush2.msra.mxu0 0.0
    %709 = vmatprep.subr.mxu0 0.0
    %710 = vmatpush2.msra.mxu0 0.0
    %711 = vmatprep.subr.mxu0 0.0
    %712 = vmatpush2.msra.mxu0 0.0
    %713 = vmatprep.subr.mxu0 0.0
    %714 = vmatpush2.msra.mxu0 0.0
    %715 = vmatprep.subr.mxu0 0.0
    %716 = vmatpush2.msra.mxu0 0.0
    %717 = vmatprep.subr.mxu0 0.0
    %718 = vmatpush2.msra.mxu0 0.0
    %719 = vmatprep.subr.mxu0 0.0
    %720 = vmatpush2.msra.mxu0 0.0
    %721 = vmatprep.subr.mxu0 0.0
    %722 = vmatpush2.msra.mxu0 0.0
    %723 = vmatprep.subr.mxu0 0.0
    %724 = vmatpush2.msra.mxu0 0.0
    %725 = vmatprep.subr.mxu0 0.0
    %726 = vmatpush2.msra.mxu0 0.0
    %727 = vmatprep.subr.mxu0 0.0
    %728 = vmatpush2.msra.mxu0 0.0
    %729 = vmatprep.subr.mxu0 0.0
    %730 = vmatpush2.msra.mxu0 0.0
    %731 = vmatprep.subr.mxu0 0.0
    %732 = vmatpush2.msra.mxu0 0.0
    %733 = vmatprep.subr.mxu0 0.0
    %734 = vmatpush2.msra.mxu0 0.0
    %735 = vmatprep.subr.mxu0 0.0
    %736 = vmatpush2.msra.mxu0 0.0
    %737 = vmatprep.mubr.f32.mxu0 0.0
    %738 = vmatmul.mubr.f32.gmra.mxu0 %v627
    %v739 = vpop.f32.mrf.mxu0
    %v740 = vadd.f32 %v662, %v739
    %v741 = vpop.f32.mrf.mxu0
    %742 = vmatprep.mubr.f32.mxu0 0.0
    %743 = vmatmul.mubr.f32.gmra.mxu0 %v628
    %v744 = vpop.f32.mrf.mxu0
    %v745 = vadd.f32 %v664, %v744
    %v746 = vpop.f32.mrf.mxu0
    %747 = vmatprep.mubr.f32.mxu0 0.0
    %748 = vmatmul.mubr.f32.gmra.mxu0 %v629
    %v749 = vpop.f32.mrf.mxu0
    %v750 = vadd.f32 %v666, %v749
    %v751 = vpop.f32.mrf.mxu0
    %752 = vmatprep.mubr.f32.mxu0 0.0
    %753 = vmatmul.mubr.f32.gmra.mxu0 %v630
    %v754 = vpop.f32.mrf.mxu0
    %v755 = vadd.f32 %v668, %v754
    %v756 = vpop.f32.mrf.mxu0
    %757 = vdwg.mxu0
    %v758 = vlaneseq
    %v759 = vshrl.u32 %v758, 7
    %v760 = vsub.s32 0, %v759
    %v761 = vrot.slane %v72, %v760
    %v762 = vadd.f32 %v740, %v761
    %v763 = vadd.f32 %v745, %v761
    %v764 = vadd.f32 %v750, %v761
    %v765 = vadd.f32 %v755, %v761
    %vm766 = vcmp.gt.f32.partialorder %v762, 0.0
    %vm767 = vcmp.gt.f32.partialorder %v763, 0.0
    %vm768 = vcmp.gt.f32.partialorder %v764, 0.0
    %vm769 = vcmp.gt.f32.partialorder %v765, 0.0
    %v770 = vmin.f32 %v762, 0.0
    %v771 = vmin.f32 %v763, 0.0
    %v772 = vmin.f32 %v764, 0.0
    %v773 = vmin.f32 %v765, 0.0
    %v774 = vmul.f32 %v770, 1.442695
    %v775 = vpow.pop %v774
    %v776 = vmul.f32 %v771, 1.442695
    %v777 = vpow.pop %v776
    %v778 = vmul.f32 %v772, 1.442695
    %v779 = vpow.pop %v778
    %v780 = vmul.f32 %v773, 1.442695
    %v781 = vpow.pop %v780
    %v782 = vsub.f32 %v775, 1.0
    %v783 = vsub.f32 %v777, 1.0
    %v784 = vsub.f32 %v779, 1.0
    %v785 = vsub.f32 %v781, 1.0
    %v786 = vsel %vm766, %v762, %v782
    %v787 = vsel %vm767, %v763, %v783
    %v788 = vsel %vm768, %v764, %v784
    %v789 = vsel %vm769, %v765, %v785
    %v790 = vld [vmem:[%s3] sm:$0xff]
    %v791 = vld [vmem:[%s3 + $0x8] sm:$0xff]
    %v792 = vld [vmem:[%s3 + $0x10] sm:$0xff]
    %v793 = vld [vmem:[%s3 + $0x18] sm:$0xff]
    %v794 = vld [vmem:[%s3 + $0x20] sm:$0xf]
    %v795 = vld [vmem:[%s3 + $0x24] sm:$0x1]
    %v797 = vsel %vm284, %v786, 0
    %v800 = vsel %vm284, %v787, 0
    %v803 = vsel %vm284, %v788, 0
    %v806 = vsel %vm284, %v789, 0
    %808 = vmatprep.subr.mxu0 0.0
    %809 = vmatpush1.msra.mxu0 0.0
    %810 = vmatprep.subr.mxu0 0.0
    %811 = vmatpush1.msra.mxu0 0.0
    %812 = vmatprep.subr.mxu0 0.0
    %813 = vmatpush1.msra.mxu0 0.0
    %814 = vmatprep.subr.mxu0 0.0
    %815 = vmatpush1.msra.mxu0 0.0
    %816 = vmatprep.subr.mxu0 0.0
    %817 = vmatpush1.msra.mxu0 0.0
    %818 = vmatprep.subr.mxu0 0.0
    %819 = vmatpush1.msra.mxu0 0.0
    %820 = vmatprep.subr.mxu0 0.0
    %821 = vmatpush1.msra.mxu0 0.0
    %822 = vmatprep.subr.mxu0 0.0
    %823 = vmatpush1.msra.mxu0 0.0
    %824 = vmatprep.subr.mxu0 0.0
    %825 = vmatpush1.msra.mxu0 0.0
    %826 = vmatprep.subr.mxu0 0.0
    %827 = vmatpush1.msra.mxu0 0.0
    %828 = vmatprep.subr.mxu0 0.0
    %829 = vmatpush1.msra.mxu0 0.0
    %830 = vmatprep.subr.mxu0 0.0
    %831 = vmatpush1.msra.mxu0 0.0
    %832 = vmatprep.subr.mxu0 0.0
    %833 = vmatpush1.msra.mxu0 %v793
    %834 = vmatprep.subr.mxu0 0.0
    %835 = vmatpush1.msra.mxu0 %v792
    %836 = vmatprep.subr.mxu0 0.0
    %837 = vmatpush1.msra.mxu0 %v791
    %838 = vmatprep.subr.mxu0 0.0
    %839 = vmatpush1.msra.mxu0 %v790
    %840 = vmatprep.subr.mxu0 0.0
    %841 = vmatpush2.msra.mxu0 0.0
    %842 = vmatprep.subr.mxu0 0.0
    %843 = vmatpush2.msra.mxu0 0.0
    %844 = vmatprep.subr.mxu0 0.0
    %845 = vmatpush2.msra.mxu0 0.0
    %846 = vmatprep.subr.mxu0 0.0
    %847 = vmatpush2.msra.mxu0 0.0
    %848 = vmatprep.subr.mxu0 0.0
    %849 = vmatpush2.msra.mxu0 0.0
    %850 = vmatprep.subr.mxu0 0.0
    %851 = vmatpush2.msra.mxu0 0.0
    %852 = vmatprep.subr.mxu0 0.0
    %853 = vmatpush2.msra.mxu0 0.0
    %854 = vmatprep.subr.mxu0 0.0
    %855 = vmatpush2.msra.mxu0 0.0
    %856 = vmatprep.subr.mxu0 0.0
    %857 = vmatpush2.msra.mxu0 0.0
    %858 = vmatprep.subr.mxu0 0.0
    %859 = vmatpush2.msra.mxu0 0.0
    %860 = vmatprep.subr.mxu0 0.0
    %861 = vmatpush2.msra.mxu0 0.0
    %862 = vmatprep.subr.mxu0 0.0
    %863 = vmatpush2.msra.mxu0 0.0
    %864 = vmatprep.subr.mxu0 0.0
    %865 = vmatpush2.msra.mxu0 0.0
    %866 = vmatprep.subr.mxu0 0.0
    %867 = vmatpush2.msra.mxu0 0.0
    %868 = vmatprep.subr.mxu0 0.0
    %869 = vmatpush2.msra.mxu0 0.0
    %870 = vmatprep.subr.mxu0 0.0
    %871 = vmatpush2.msra.mxu0 0.0
    %872 = vmatprep.mubr.f32.mxu0 0.0
    %873 = vmatmul.mubr.f32.gmra.mxu0 %v797
    %v874 = vpop.f32.mrf.mxu0
    %v875 = vadd.f32 0.0, %v874
    %v876 = vpop.f32.mrf.mxu0
    %877 = vmatprep.mubr.f32.mxu0 0.0
    %878 = vmatmul.mubr.f32.gmra.mxu0 %v800
    %v879 = vpop.f32.mrf.mxu0
    %v880 = vadd.f32 0.0, %v879
    %v881 = vpop.f32.mrf.mxu0
    %882 = vmatprep.mubr.f32.mxu0 0.0
    %883 = vmatmul.mubr.f32.gmra.mxu0 %v803
    %v884 = vpop.f32.mrf.mxu0
    %v885 = vadd.f32 0.0, %v884
    %v886 = vpop.f32.mrf.mxu0
    %887 = vmatprep.mubr.f32.mxu0 0.0
    %888 = vmatmul.mubr.f32.gmra.mxu0 %v806
    %v889 = vpop.f32.mrf.mxu0
    %v890 = vadd.f32 0.0, %v889
    %v891 = vpop.f32.mrf.mxu0
    %892 = vdwg.mxu0
    %v894 = vsel %vm284, %v794, 0
    %896 = vmatprep.subr.mxu0 0.0
    %897 = vmatpush1.xpose.msra.mxu0 0.0
    %898 = vmatprep.subr.mxu0 0.0
    %899 = vmatpush1.xpose.msra.mxu0 0.0
    %900 = vmatprep.subr.mxu0 0.0
    %901 = vmatpush1.xpose.msra.mxu0 0.0
    %902 = vmatprep.subr.mxu0 0.0
    %903 = vmatpush1.xpose.msra.mxu0 0.0
    %904 = vmatprep.subr.mxu0 0.0
    %905 = vmatpush1.xpose.msra.mxu0 0.0
    %906 = vmatprep.subr.mxu0 0.0
    %907 = vmatpush1.xpose.msra.mxu0 0.0
    %908 = vmatprep.subr.mxu0 0.0
    %909 = vmatpush1.xpose.msra.mxu0 0.0
    %910 = vmatprep.subr.mxu0 0.0
    %911 = vmatpush1.xpose.msra.mxu0 0.0
    %912 = vmatprep.subr.mxu0 0.0
    %913 = vmatpush1.xpose.msra.mxu0 0.0
    %914 = vmatprep.subr.mxu0 0.0
    %915 = vmatpush1.xpose.msra.mxu0 0.0
    %916 = vmatprep.subr.mxu0 0.0
    %917 = vmatpush1.xpose.msra.mxu0 0.0
    %918 = vmatprep.subr.mxu0 0.0
    %919 = vmatpush1.xpose.msra.mxu0 0.0
    %920 = vmatprep.subr.mxu0 0.0
    %921 = vmatpush1.xpose.msra.mxu0 %v806
    %922 = vmatprep.subr.mxu0 0.0
    %923 = vmatpush1.xpose.msra.mxu0 %v803
    %924 = vmatprep.subr.mxu0 0.0
    %925 = vmatpush1.xpose.msra.mxu0 %v800
    %926 = vmatprep.subr.mxu0 0.0
    %927 = vmatpush1.xpose.msra.mxu0 %v797
    %928 = vmatprep.subr.mxu0 0.0
    %929 = vmatpush2.xpose.msra.mxu0 0.0
    %930 = vmatprep.subr.mxu0 0.0
    %931 = vmatpush2.xpose.msra.mxu0 0.0
    %932 = vmatprep.subr.mxu0 0.0
    %933 = vmatpush2.xpose.msra.mxu0 0.0
    %934 = vmatprep.subr.mxu0 0.0
    %935 = vmatpush2.xpose.msra.mxu0 0.0
    %936 = vmatprep.subr.mxu0 0.0
    %937 = vmatpush2.xpose.msra.mxu0 0.0
    %938 = vmatprep.subr.mxu0 0.0
    %939 = vmatpush2.xpose.msra.mxu0 0.0
    %940 = vmatprep.subr.mxu0 0.0
    %941 = vmatpush2.xpose.msra.mxu0 0.0
    %942 = vmatprep.subr.mxu0 0.0
    %943 = vmatpush2.xpose.msra.mxu0 0.0
    %944 = vmatprep.subr.mxu0 0.0
    %945 = vmatpush2.xpose.msra.mxu0 0.0
    %946 = vmatprep.subr.mxu0 0.0
    %947 = vmatpush2.xpose.msra.mxu0 0.0
    %948 = vmatprep.subr.mxu0 0.0
    %949 = vmatpush2.xpose.msra.mxu0 0.0
    %950 = vmatprep.subr.mxu0 0.0
    %951 = vmatpush2.xpose.msra.mxu0 0.0
    %952 = vmatprep.subr.mxu0 0.0
    %953 = vmatpush2.xpose.msra.mxu0 0.0
    %954 = vmatprep.subr.mxu0 0.0
    %955 = vmatpush2.xpose.msra.mxu0 0.0
    %956 = vmatprep.subr.mxu0 0.0
    %957 = vmatpush2.xpose.msra.mxu0 0.0
    %958 = vmatprep.subr.mxu0 0.0
    %959 = vmatpush2.xpose.msra.mxu0 0.0
    %960 = vmatprep.mubr.f32.mxu0 0.0
    %961 = vmatmul.mubr.f32.gmra.mxu0 %v894
    %v962 = vpop.f32.mrf.mxu0
    %v963 = vadd.f32 0.0, %v962
    %v964 = vpop.f32.mrf.mxu0
    %965 = vdwg.mxu0
    %967 = vset.pattern.permute.xlu0 32
    %968 = vperm.xlu0 %967, %v875
    %v969 = vpop.permute.xlu0 %968
    %972 = vset.pattern.permute.xlu0 32
    %973 = vperm.xlu0 %972, %v880
    %v974 = vpop.permute.xlu0 %973
    %977 = vset.pattern.permute.xlu0 32
    %978 = vperm.xlu0 %977, %v885
    %v979 = vpop.permute.xlu0 %978
    %982 = vset.pattern.permute.xlu0 32
    %983 = vperm.xlu0 %982, %v890
    %v984 = vpop.permute.xlu0 %983
    %v986 = vlaneseq
    %v987 = vshrl.u32 %v986, 7
    %v988 = vsub.s32 0, %v987
    %v989 = vrot.slane %v963, %v988
    %v990 = vadd.f32 %v969, %v989
    %v991 = vadd.f32 %v974, %v989
    %v992 = vadd.f32 %v979, %v989
    %v993 = vadd.f32 %v984, %v989
    %v994 = vmul.f32 %v990, 0.2
    %v995 = vmul.f32 %v991, 0.2
    %v996 = vmul.f32 %v992, 0.2
    %v997 = vmul.f32 %v993, 0.2
    %v998 = vmax.f32 %v990, %v994
    %v999 = vmax.f32 %v991, %v995
    %v1000 = vmax.f32 %v992, %v996
    %v1001 = vmax.f32 %v993, %v997
    %v1002 = vadd.f32 %v998, %v61
    %v1003 = vadd.f32 %v999, %v62
    %v1004 = vadd.f32 %v1000, %v63
    %v1005 = vadd.f32 %v1001, %v64
    %v1006 = vsel %vm284, %v1002, -inf
    %1007 = vmax.xlane.f32.xlu0 %v1006
    %v1008 = vpop.xlane.xlu0 %1007
    %v1009 = vsel %vm284, %v1003, -inf
    %1010 = vmax.xlane.f32.xlu0 %v1009
    %v1011 = vpop.xlane.xlu0 %1010
    %v1012 = vsel %vm284, %v1004, -inf
    %1013 = vmax.xlane.f32.xlu0 %v1012
    %v1014 = vpop.xlane.xlu0 %1013
    %v1015 = vsel %vm284, %v1005, -inf
    %1016 = vmax.xlane.f32.xlu0 %v1015
    %v1017 = vpop.xlane.xlu0 %1016
    %v1018 = vsub.f32 %v1002, %v1008
    %v1019 = vsub.f32 %v1003, %v1011
    %v1020 = vsub.f32 %v1004, %v1014
    %v1021 = vsub.f32 %v1005, %v1017
    %v1022 = vmul.f32 %v1018, 1.442695
    %v1023 = vpow.pop %v1022
    %v1024 = vmul.f32 %v1019, 1.442695
    %v1025 = vpow.pop %v1024
    %v1026 = vmul.f32 %v1020, 1.442695
    %v1027 = vpow.pop %v1026
    %v1028 = vmul.f32 %v1021, 1.442695
    %v1029 = vpow.pop %v1028
    %v1030 = vsel %vm284, %v1023, 0.0
    %1031 = vadd.xlane.f32.xlu0 %v1030
    %v1032 = vpop.xlane.xlu0 %1031
    %v1033 = vsel %vm284, %v1025, 0.0
    %1034 = vadd.xlane.f32.xlu0 %v1033
    %v1035 = vpop.xlane.xlu0 %1034
    %v1036 = vsel %vm284, %v1027, 0.0
    %1037 = vadd.xlane.f32.xlu0 %v1036
    %v1038 = vpop.xlane.xlu0 %1037
    %v1039 = vsel %vm284, %v1029, 0.0
    %1040 = vadd.xlane.f32.xlu0 %v1039
    %v1041 = vpop.xlane.xlu0 %1040
    %v1042 = vrcp.pop %v1032
    %v1043 = vrcp.pop %v1035
    %v1044 = vrcp.pop %v1038
    %v1045 = vrcp.pop %v1041
    %v1046 = vmul.f32 %v1023, %v1042
    %v1047 = vmul.f32 %v1025, %v1043
    %v1048 = vmul.f32 %v1027, %v1044
    %v1049 = vmul.f32 %v1029, %v1045
    %1050 = vset.pattern.permute.xlu0 33
    %1051 = vperm.xlu0 %1050, %v875
    %v1052 = vpop.permute.xlu0 %1051
    %1054 = vset.pattern.permute.xlu0 33
    %1055 = vperm.xlu0 %1054, %v880
    %v1056 = vpop.permute.xlu0 %1055
    %1058 = vset.pattern.permute.xlu0 33
    %1059 = vperm.xlu0 %1058, %v885
    %v1060 = vpop.permute.xlu0 %1059
    %1062 = vset.pattern.permute.xlu0 33
    %1063 = vperm.xlu0 %1062, %v890
    %v1064 = vpop.permute.xlu0 %1063
    %v1066 = vlaneseq
    %v1067 = vshrl.u32 %v1066, 7
    %v1068 = vsub.s32 1, %v1067
    %v1069 = vrot.slane %v963, %v1068
    %v1070 = vadd.f32 %v1052, %v1069
    %v1071 = vadd.f32 %v1056, %v1069
    %v1072 = vadd.f32 %v1060, %v1069
    %v1073 = vadd.f32 %v1064, %v1069
    %v1074 = vmul.f32 %v1070, 0.2
    %v1075 = vmul.f32 %v1071, 0.2
    %v1076 = vmul.f32 %v1072, 0.2
    %v1077 = vmul.f32 %v1073, 0.2
    %v1078 = vmax.f32 %v1070, %v1074
    %v1079 = vmax.f32 %v1071, %v1075
    %v1080 = vmax.f32 %v1072, %v1076
    %v1081 = vmax.f32 %v1073, %v1077
    %v1082 = vadd.f32 %v1078, %v61
    %v1083 = vadd.f32 %v1079, %v62
    %v1084 = vadd.f32 %v1080, %v63
    %v1085 = vadd.f32 %v1081, %v64
    %v1086 = vsel %vm284, %v1082, -inf
    %1087 = vmax.xlane.f32.xlu0 %v1086
    %v1088 = vpop.xlane.xlu0 %1087
    %v1089 = vsel %vm284, %v1083, -inf
    %1090 = vmax.xlane.f32.xlu0 %v1089
    %v1091 = vpop.xlane.xlu0 %1090
    %v1092 = vsel %vm284, %v1084, -inf
    %1093 = vmax.xlane.f32.xlu0 %v1092
    %v1094 = vpop.xlane.xlu0 %1093
    %v1095 = vsel %vm284, %v1085, -inf
    %1096 = vmax.xlane.f32.xlu0 %v1095
    %v1097 = vpop.xlane.xlu0 %1096
    %v1098 = vsub.f32 %v1082, %v1088
    %v1099 = vsub.f32 %v1083, %v1091
    %v1100 = vsub.f32 %v1084, %v1094
    %v1101 = vsub.f32 %v1085, %v1097
    %v1102 = vmul.f32 %v1098, 1.442695
    %v1103 = vpow.pop %v1102
    %v1104 = vmul.f32 %v1099, 1.442695
    %v1105 = vpow.pop %v1104
    %v1106 = vmul.f32 %v1100, 1.442695
    %v1107 = vpow.pop %v1106
    %v1108 = vmul.f32 %v1101, 1.442695
    %v1109 = vpow.pop %v1108
    %v1110 = vsel %vm284, %v1103, 0.0
    %1111 = vadd.xlane.f32.xlu0 %v1110
    %v1112 = vpop.xlane.xlu0 %1111
    %v1113 = vsel %vm284, %v1105, 0.0
    %1114 = vadd.xlane.f32.xlu0 %v1113
    %v1115 = vpop.xlane.xlu0 %1114
    %v1116 = vsel %vm284, %v1107, 0.0
    %1117 = vadd.xlane.f32.xlu0 %v1116
    %v1118 = vpop.xlane.xlu0 %1117
    %v1119 = vsel %vm284, %v1109, 0.0
    %1120 = vadd.xlane.f32.xlu0 %v1119
    %v1121 = vpop.xlane.xlu0 %1120
    %v1122 = vrcp.pop %v1112
    %v1123 = vrcp.pop %v1115
    %v1124 = vrcp.pop %v1118
    %v1125 = vrcp.pop %v1121
    %v1126 = vmul.f32 %v1103, %v1122
    %v1127 = vmul.f32 %v1105, %v1123
    %v1128 = vmul.f32 %v1107, %v1124
    %v1129 = vmul.f32 %v1109, %v1125
    %1130 = vset.pattern.permute.xlu0 34
    %1131 = vperm.xlu0 %1130, %v875
    %v1132 = vpop.permute.xlu0 %1131
    %1134 = vset.pattern.permute.xlu0 34
    %1135 = vperm.xlu0 %1134, %v880
    %v1136 = vpop.permute.xlu0 %1135
    %1138 = vset.pattern.permute.xlu0 34
    %1139 = vperm.xlu0 %1138, %v885
    %v1140 = vpop.permute.xlu0 %1139
    %1142 = vset.pattern.permute.xlu0 34
    %1143 = vperm.xlu0 %1142, %v890
    %v1144 = vpop.permute.xlu0 %1143
    %v1146 = vlaneseq
    %v1147 = vshrl.u32 %v1146, 7
    %v1148 = vsub.s32 2, %v1147
    %v1149 = vrot.slane %v963, %v1148
    %v1150 = vadd.f32 %v1132, %v1149
    %v1151 = vadd.f32 %v1136, %v1149
    %v1152 = vadd.f32 %v1140, %v1149
    %v1153 = vadd.f32 %v1144, %v1149
    %v1154 = vmul.f32 %v1150, 0.2
    %v1155 = vmul.f32 %v1151, 0.2
    %v1156 = vmul.f32 %v1152, 0.2
    %v1157 = vmul.f32 %v1153, 0.2
    %v1158 = vmax.f32 %v1150, %v1154
    %v1159 = vmax.f32 %v1151, %v1155
    %v1160 = vmax.f32 %v1152, %v1156
    %v1161 = vmax.f32 %v1153, %v1157
    %v1162 = vadd.f32 %v1158, %v61
    %v1163 = vadd.f32 %v1159, %v62
    %v1164 = vadd.f32 %v1160, %v63
    %v1165 = vadd.f32 %v1161, %v64
    %v1166 = vsel %vm284, %v1162, -inf
    %1167 = vmax.xlane.f32.xlu0 %v1166
    %v1168 = vpop.xlane.xlu0 %1167
    %v1169 = vsel %vm284, %v1163, -inf
    %1170 = vmax.xlane.f32.xlu0 %v1169
    %v1171 = vpop.xlane.xlu0 %1170
    %v1172 = vsel %vm284, %v1164, -inf
    %1173 = vmax.xlane.f32.xlu0 %v1172
    %v1174 = vpop.xlane.xlu0 %1173
    %v1175 = vsel %vm284, %v1165, -inf
    %1176 = vmax.xlane.f32.xlu0 %v1175
    %v1177 = vpop.xlane.xlu0 %1176
    %v1178 = vsub.f32 %v1162, %v1168
    %v1179 = vsub.f32 %v1163, %v1171
    %v1180 = vsub.f32 %v1164, %v1174
    %v1181 = vsub.f32 %v1165, %v1177
    %v1182 = vmul.f32 %v1178, 1.442695
    %v1183 = vpow.pop %v1182
    %v1184 = vmul.f32 %v1179, 1.442695
    %v1185 = vpow.pop %v1184
    %v1186 = vmul.f32 %v1180, 1.442695
    %v1187 = vpow.pop %v1186
    %v1188 = vmul.f32 %v1181, 1.442695
    %v1189 = vpow.pop %v1188
    %v1190 = vsel %vm284, %v1183, 0.0
    %1191 = vadd.xlane.f32.xlu0 %v1190
    %v1192 = vpop.xlane.xlu0 %1191
    %v1193 = vsel %vm284, %v1185, 0.0
    %1194 = vadd.xlane.f32.xlu0 %v1193
    %v1195 = vpop.xlane.xlu0 %1194
    %v1196 = vsel %vm284, %v1187, 0.0
    %1197 = vadd.xlane.f32.xlu0 %v1196
    %v1198 = vpop.xlane.xlu0 %1197
    %v1199 = vsel %vm284, %v1189, 0.0
    %1200 = vadd.xlane.f32.xlu0 %v1199
    %v1201 = vpop.xlane.xlu0 %1200
    %v1202 = vrcp.pop %v1192
    %v1203 = vrcp.pop %v1195
    %v1204 = vrcp.pop %v1198
    %v1205 = vrcp.pop %v1201
    %v1206 = vmul.f32 %v1183, %v1202
    %v1207 = vmul.f32 %v1185, %v1203
    %v1208 = vmul.f32 %v1187, %v1204
    %v1209 = vmul.f32 %v1189, %v1205
    %1210 = vset.pattern.permute.xlu0 35
    %1211 = vperm.xlu0 %1210, %v875
    %v1212 = vpop.permute.xlu0 %1211
    %1214 = vset.pattern.permute.xlu0 35
    %1215 = vperm.xlu0 %1214, %v880
    %v1216 = vpop.permute.xlu0 %1215
    %1218 = vset.pattern.permute.xlu0 35
    %1219 = vperm.xlu0 %1218, %v885
    %v1220 = vpop.permute.xlu0 %1219
    %1222 = vset.pattern.permute.xlu0 35
    %1223 = vperm.xlu0 %1222, %v890
    %v1224 = vpop.permute.xlu0 %1223
    %v1226 = vlaneseq
    %v1227 = vshrl.u32 %v1226, 7
    %v1228 = vsub.s32 3, %v1227
    %v1229 = vrot.slane %v963, %v1228
    %v1230 = vadd.f32 %v1212, %v1229
    %v1231 = vadd.f32 %v1216, %v1229
    %v1232 = vadd.f32 %v1220, %v1229
    %v1233 = vadd.f32 %v1224, %v1229
    %v1234 = vmul.f32 %v1230, 0.2
    %v1235 = vmul.f32 %v1231, 0.2
    %v1236 = vmul.f32 %v1232, 0.2
    %v1237 = vmul.f32 %v1233, 0.2
    %v1238 = vmax.f32 %v1230, %v1234
    %v1239 = vmax.f32 %v1231, %v1235
    %v1240 = vmax.f32 %v1232, %v1236
    %v1241 = vmax.f32 %v1233, %v1237
    %v1242 = vadd.f32 %v1238, %v61
    %v1243 = vadd.f32 %v1239, %v62
    %v1244 = vadd.f32 %v1240, %v63
    %v1245 = vadd.f32 %v1241, %v64
    %v1246 = vsel %vm284, %v1242, -inf
    %1247 = vmax.xlane.f32.xlu0 %v1246
    %v1248 = vpop.xlane.xlu0 %1247
    %v1249 = vsel %vm284, %v1243, -inf
    %1250 = vmax.xlane.f32.xlu0 %v1249
    %v1251 = vpop.xlane.xlu0 %1250
    %v1252 = vsel %vm284, %v1244, -inf
    %1253 = vmax.xlane.f32.xlu0 %v1252
    %v1254 = vpop.xlane.xlu0 %1253
    %v1255 = vsel %vm284, %v1245, -inf
    %1256 = vmax.xlane.f32.xlu0 %v1255
    %v1257 = vpop.xlane.xlu0 %1256
    %v1258 = vsub.f32 %v1242, %v1248
    %v1259 = vsub.f32 %v1243, %v1251
    %v1260 = vsub.f32 %v1244, %v1254
    %v1261 = vsub.f32 %v1245, %v1257
    %v1262 = vmul.f32 %v1258, 1.442695
    %v1263 = vpow.pop %v1262
    %v1264 = vmul.f32 %v1259, 1.442695
    %v1265 = vpow.pop %v1264
    %v1266 = vmul.f32 %v1260, 1.442695
    %v1267 = vpow.pop %v1266
    %v1268 = vmul.f32 %v1261, 1.442695
    %v1269 = vpow.pop %v1268
    %v1270 = vsel %vm284, %v1263, 0.0
    %1271 = vadd.xlane.f32.xlu0 %v1270
    %v1272 = vpop.xlane.xlu0 %1271
    %v1273 = vsel %vm284, %v1265, 0.0
    %1274 = vadd.xlane.f32.xlu0 %v1273
    %v1275 = vpop.xlane.xlu0 %1274
    %v1276 = vsel %vm284, %v1267, 0.0
    %1277 = vadd.xlane.f32.xlu0 %v1276
    %v1278 = vpop.xlane.xlu0 %1277
    %v1279 = vsel %vm284, %v1269, 0.0
    %1280 = vadd.xlane.f32.xlu0 %v1279
    %v1281 = vpop.xlane.xlu0 %1280
    %v1282 = vrcp.pop %v1272
    %v1283 = vrcp.pop %v1275
    %v1284 = vrcp.pop %v1278
    %v1285 = vrcp.pop %v1281
    %v1286 = vmul.f32 %v1263, %v1282
    %v1287 = vmul.f32 %v1265, %v1283
    %v1288 = vmul.f32 %v1267, %v1284
    %v1289 = vmul.f32 %v1269, %v1285
    %1294 = vrot.lane.b32.xlu0 %v1126, 32
    %v1295 = vpop.permute.xlu0 %1294
    %1296 = vrot.lane.b32.xlu0 %v1127, 32
    %v1297 = vpop.permute.xlu0 %1296
    %1298 = vrot.lane.b32.xlu0 %v1128, 32
    %v1299 = vpop.permute.xlu0 %1298
    %1300 = vrot.lane.b32.xlu0 %v1129, 32
    %v1301 = vpop.permute.xlu0 %1300
    %1310 = vrot.lane.b32.xlu0 %v1206, 64
    %v1311 = vpop.permute.xlu0 %1310
    %1312 = vrot.lane.b32.xlu0 %v1207, 64
    %v1313 = vpop.permute.xlu0 %1312
    %1314 = vrot.lane.b32.xlu0 %v1208, 64
    %v1315 = vpop.permute.xlu0 %1314
    %1316 = vrot.lane.b32.xlu0 %v1209, 64
    %v1317 = vpop.permute.xlu0 %1316
    %1326 = vrot.lane.b32.xlu0 %v1286, 96
    %v1327 = vpop.permute.xlu0 %1326
    %1328 = vrot.lane.b32.xlu0 %v1287, 96
    %v1329 = vpop.permute.xlu0 %1328
    %1330 = vrot.lane.b32.xlu0 %v1288, 96
    %v1331 = vpop.permute.xlu0 %1330
    %1332 = vrot.lane.b32.xlu0 %v1289, 96
    %v1333 = vpop.permute.xlu0 %1332
    %v1338 = vsel %vm284, %v1046, %v1295
    %v1339 = vsel %vm284, %v1047, %v1297
    %v1340 = vsel %vm284, %v1048, %v1299
    %v1341 = vsel %vm284, %v1049, %v1301
    %v1342 = vsel %vm621, %v1338, %v1311
    %v1343 = vsel %vm621, %v1339, %v1313
    %v1344 = vsel %vm621, %v1340, %v1315
    %v1345 = vsel %vm621, %v1341, %v1317
    %v1346 = vsel %vm626, %v1342, %v1327
    %v1347 = vsel %vm626, %v1343, %v1329
    %v1348 = vsel %vm626, %v1344, %v1331
    %v1349 = vsel %vm626, %v1345, %v1333
    %v1350 = vsel %vm635, %v875, 0.0
    %v1351 = vsel %vm635, %v880, 0.0
    %v1352 = vsel %vm635, %v885, 0.0
    %v1353 = vsel %vm635, %v890, 0.0
    %v1354 = vsel %vm642, %v875, 0.0
    %v1355 = vsel %vm642, %v880, 0.0
    %v1356 = vsel %vm642, %v885, 0.0
    %v1357 = vsel %vm642, %v890, 0.0
    %v1358 = vsel %vm649, %v875, 0.0
    %v1359 = vsel %vm649, %v880, 0.0
    %v1360 = vsel %vm649, %v885, 0.0
    %v1361 = vsel %vm649, %v890, 0.0
    %v1362 = vsel %vm656, %v875, 0.0
    %v1363 = vsel %vm656, %v880, 0.0
    %v1364 = vsel %vm656, %v885, 0.0
    %v1365 = vsel %vm656, %v890, 0.0
    %1366 = vmatprep.subr.mxu0 0.0
    %1367 = vmatpush1.msra.mxu0 %v1365
    %1368 = vmatprep.subr.mxu0 0.0
    %1369 = vmatpush1.msra.mxu0 %v1364
    %1370 = vmatprep.subr.mxu0 0.0
    %1371 = vmatpush1.msra.mxu0 %v1363
    %1372 = vmatprep.subr.mxu0 0.0
    %1373 = vmatpush1.msra.mxu0 %v1362
    %1374 = vmatprep.subr.mxu0 0.0
    %1375 = vmatpush1.msra.mxu0 %v1361
    %1376 = vmatprep.subr.mxu0 0.0
    %1377 = vmatpush1.msra.mxu0 %v1360
    %1378 = vmatprep.subr.mxu0 0.0
    %1379 = vmatpush1.msra.mxu0 %v1359
    %1380 = vmatprep.subr.mxu0 0.0
    %1381 = vmatpush1.msra.mxu0 %v1358
    %1382 = vmatprep.subr.mxu0 0.0
    %1383 = vmatpush1.msra.mxu0 %v1357
    %1384 = vmatprep.subr.mxu0 0.0
    %1385 = vmatpush1.msra.mxu0 %v1356
    %1386 = vmatprep.subr.mxu0 0.0
    %1387 = vmatpush1.msra.mxu0 %v1355
    %1388 = vmatprep.subr.mxu0 0.0
    %1389 = vmatpush1.msra.mxu0 %v1354
    %1390 = vmatprep.subr.mxu0 0.0
    %1391 = vmatpush1.msra.mxu0 %v1353
    %1392 = vmatprep.subr.mxu0 0.0
    %1393 = vmatpush1.msra.mxu0 %v1352
    %1394 = vmatprep.subr.mxu0 0.0
    %1395 = vmatpush1.msra.mxu0 %v1351
    %1396 = vmatprep.subr.mxu0 0.0
    %1397 = vmatpush1.msra.mxu0 %v1350
    %1398 = vmatprep.subr.mxu0 0.0
    %1399 = vmatpush2.msra.mxu0 0.0
    %1400 = vmatprep.subr.mxu0 0.0
    %1401 = vmatpush2.msra.mxu0 0.0
    %1402 = vmatprep.subr.mxu0 0.0
    %1403 = vmatpush2.msra.mxu0 0.0
    %1404 = vmatprep.subr.mxu0 0.0
    %1405 = vmatpush2.msra.mxu0 0.0
    %1406 = vmatprep.subr.mxu0 0.0
    %1407 = vmatpush2.msra.mxu0 0.0
    %1408 = vmatprep.subr.mxu0 0.0
    %1409 = vmatpush2.msra.mxu0 0.0
    %1410 = vmatprep.subr.mxu0 0.0
    %1411 = vmatpush2.msra.mxu0 0.0
    %1412 = vmatprep.subr.mxu0 0.0
    %1413 = vmatpush2.msra.mxu0 0.0
    %1414 = vmatprep.subr.mxu0 0.0
    %1415 = vmatpush2.msra.mxu0 0.0
    %1416 = vmatprep.subr.mxu0 0.0
    %1417 = vmatpush2.msra.mxu0 0.0
    %1418 = vmatprep.subr.mxu0 0.0
    %1419 = vmatpush2.msra.mxu0 0.0
    %1420 = vmatprep.subr.mxu0 0.0
    %1421 = vmatpush2.msra.mxu0 0.0
    %1422 = vmatprep.subr.mxu0 0.0
    %1423 = vmatpush2.msra.mxu0 0.0
    %1424 = vmatprep.subr.mxu0 0.0
    %1425 = vmatpush2.msra.mxu0 0.0
    %1426 = vmatprep.subr.mxu0 0.0
    %1427 = vmatpush2.msra.mxu0 0.0
    %1428 = vmatprep.subr.mxu0 0.0
    %1429 = vmatpush2.msra.mxu0 0.0
    %1430 = vmatprep.mubr.f32.mxu0 0.0
    %1431 = vmatmul.mubr.f32.gmra.mxu0 %v1346
    %v1432 = vpop.f32.mrf.mxu0
    %v1433 = vadd.f32 %v786, %v1432
    %v1434 = vpop.f32.mrf.mxu0
    %1435 = vmatprep.mubr.f32.mxu0 0.0
    %1436 = vmatmul.mubr.f32.gmra.mxu0 %v1347
    %v1437 = vpop.f32.mrf.mxu0
    %v1438 = vadd.f32 %v787, %v1437
    %v1439 = vpop.f32.mrf.mxu0
    %1440 = vmatprep.mubr.f32.mxu0 0.0
    %1441 = vmatmul.mubr.f32.gmra.mxu0 %v1348
    %v1442 = vpop.f32.mrf.mxu0
    %v1443 = vadd.f32 %v788, %v1442
    %v1444 = vpop.f32.mrf.mxu0
    %1445 = vmatprep.mubr.f32.mxu0 0.0
    %1446 = vmatmul.mubr.f32.gmra.mxu0 %v1349
    %v1447 = vpop.f32.mrf.mxu0
    %v1448 = vadd.f32 %v789, %v1447
    %v1449 = vpop.f32.mrf.mxu0
    %1450 = vdwg.mxu0
    %v1451 = vlaneseq
    %v1452 = vshrl.u32 %v1451, 7
    %v1453 = vsub.s32 0, %v1452
    %v1454 = vrot.slane %v795, %v1453
    %v1455 = vadd.f32 %v1433, %v1454
    %v1456 = vadd.f32 %v1438, %v1454
    %v1457 = vadd.f32 %v1443, %v1454
    %v1458 = vadd.f32 %v1448, %v1454
    %vm1459 = vcmp.gt.f32.partialorder %v1455, 0.0
    %vm1460 = vcmp.gt.f32.partialorder %v1456, 0.0
    %vm1461 = vcmp.gt.f32.partialorder %v1457, 0.0
    %vm1462 = vcmp.gt.f32.partialorder %v1458, 0.0
    %v1463 = vmin.f32 %v1455, 0.0
    %v1464 = vmin.f32 %v1456, 0.0
    %v1465 = vmin.f32 %v1457, 0.0
    %v1466 = vmin.f32 %v1458, 0.0
    %v1467 = vmul.f32 %v1463, 1.442695
    %v1468 = vpow.pop %v1467
    %v1469 = vmul.f32 %v1464, 1.442695
    %v1470 = vpow.pop %v1469
    %v1471 = vmul.f32 %v1465, 1.442695
    %v1472 = vpow.pop %v1471
    %v1473 = vmul.f32 %v1466, 1.442695
    %v1474 = vpow.pop %v1473
    %v1475 = vsub.f32 %v1468, 1.0
    %v1476 = vsub.f32 %v1470, 1.0
    %v1477 = vsub.f32 %v1472, 1.0
    %v1478 = vsub.f32 %v1474, 1.0
    %v1479 = vsel %vm1459, %v1455, %v1475
    %v1480 = vsel %vm1460, %v1456, %v1476
    %v1481 = vsel %vm1461, %v1457, %v1477
    %v1482 = vsel %vm1462, %v1458, %v1478
    %v1483 = vld [vmem:[#allocation6] sm:$0xff]
    %v1484 = vld [vmem:[#allocation6 + $0x8] sm:$0xff]
    %v1485 = vld [vmem:[#allocation6 + $0x10] sm:$0xff]
    %v1486 = vld [vmem:[#allocation6 + $0x18] sm:$0xff]
    %v1487 = vld [vmem:[#allocation6 + $0x20] sm:$0xf]
    %v1488 = vld [vmem:[#allocation6 + $0x24] sm:$0x1]
    %v1490 = vsel %vm284, %v1479, 0
    %v1493 = vsel %vm284, %v1480, 0
    %v1496 = vsel %vm284, %v1481, 0
    %v1499 = vsel %vm284, %v1482, 0
    %1501 = vmatprep.subr.mxu0 0.0
    %1502 = vmatpush1.msra.mxu0 0.0
    %1503 = vmatprep.subr.mxu0 0.0
    %1504 = vmatpush1.msra.mxu0 0.0
    %1505 = vmatprep.subr.mxu0 0.0
    %1506 = vmatpush1.msra.mxu0 0.0
    %1507 = vmatprep.subr.mxu0 0.0
    %1508 = vmatpush1.msra.mxu0 0.0
    %1509 = vmatprep.subr.mxu0 0.0
    %1510 = vmatpush1.msra.mxu0 0.0
    %1511 = vmatprep.subr.mxu0 0.0
    %1512 = vmatpush1.msra.mxu0 0.0
    %1513 = vmatprep.subr.mxu0 0.0
    %1514 = vmatpush1.msra.mxu0 0.0
    %1515 = vmatprep.subr.mxu0 0.0
    %1516 = vmatpush1.msra.mxu0 0.0
    %1517 = vmatprep.subr.mxu0 0.0
    %1518 = vmatpush1.msra.mxu0 0.0
    %1519 = vmatprep.subr.mxu0 0.0
    %1520 = vmatpush1.msra.mxu0 0.0
    %1521 = vmatprep.subr.mxu0 0.0
    %1522 = vmatpush1.msra.mxu0 0.0
    %1523 = vmatprep.subr.mxu0 0.0
    %1524 = vmatpush1.msra.mxu0 0.0
    %1525 = vmatprep.subr.mxu0 0.0
    %1526 = vmatpush1.msra.mxu0 %v1486
    %1527 = vmatprep.subr.mxu0 0.0
    %1528 = vmatpush1.msra.mxu0 %v1485
    %1529 = vmatprep.subr.mxu0 0.0
    %1530 = vmatpush1.msra.mxu0 %v1484
    %1531 = vmatprep.subr.mxu0 0.0
    %1532 = vmatpush1.msra.mxu0 %v1483
    %1533 = vmatprep.subr.mxu0 0.0
    %1534 = vmatpush2.msra.mxu0 0.0
    %1535 = vmatprep.subr.mxu0 0.0
    %1536 = vmatpush2.msra.mxu0 0.0
    %1537 = vmatprep.subr.mxu0 0.0
    %1538 = vmatpush2.msra.mxu0 0.0
    %1539 = vmatprep.subr.mxu0 0.0
    %1540 = vmatpush2.msra.mxu0 0.0
    %1541 = vmatprep.subr.mxu0 0.0
    %1542 = vmatpush2.msra.mxu0 0.0
    %1543 = vmatprep.subr.mxu0 0.0
    %1544 = vmatpush2.msra.mxu0 0.0
    %1545 = vmatprep.subr.mxu0 0.0
    %1546 = vmatpush2.msra.mxu0 0.0
    %1547 = vmatprep.subr.mxu0 0.0
    %1548 = vmatpush2.msra.mxu0 0.0
    %1549 = vmatprep.subr.mxu0 0.0
    %1550 = vmatpush2.msra.mxu0 0.0
    %1551 = vmatprep.subr.mxu0 0.0
    %1552 = vmatpush2.msra.mxu0 0.0
    %1553 = vmatprep.subr.mxu0 0.0
    %1554 = vmatpush2.msra.mxu0 0.0
    %1555 = vmatprep.subr.mxu0 0.0
    %1556 = vmatpush2.msra.mxu0 0.0
    %1557 = vmatprep.subr.mxu0 0.0
    %1558 = vmatpush2.msra.mxu0 0.0
    %1559 = vmatprep.subr.mxu0 0.0
    %1560 = vmatpush2.msra.mxu0 0.0
    %1561 = vmatprep.subr.mxu0 0.0
    %1562 = vmatpush2.msra.mxu0 0.0
    %1563 = vmatprep.subr.mxu0 0.0
    %1564 = vmatpush2.msra.mxu0 0.0
    %1565 = vmatprep.mubr.f32.mxu0 0.0
    %1566 = vmatmul.mubr.f32.gmra.mxu0 %v1490
    %v1567 = vpop.f32.mrf.mxu0
    %v1568 = vadd.f32 0.0, %v1567
    %v1569 = vpop.f32.mrf.mxu0
    %1570 = vmatprep.mubr.f32.mxu0 0.0
    %1571 = vmatmul.mubr.f32.gmra.mxu0 %v1493
    %v1572 = vpop.f32.mrf.mxu0
    %v1573 = vadd.f32 0.0, %v1572
    %v1574 = vpop.f32.mrf.mxu0
    %1575 = vmatprep.mubr.f32.mxu0 0.0
    %1576 = vmatmul.mubr.f32.gmra.mxu0 %v1496
    %v1577 = vpop.f32.mrf.mxu0
    %v1578 = vadd.f32 0.0, %v1577
    %v1579 = vpop.f32.mrf.mxu0
    %1580 = vmatprep.mubr.f32.mxu0 0.0
    %1581 = vmatmul.mubr.f32.gmra.mxu0 %v1499
    %v1582 = vpop.f32.mrf.mxu0
    %v1583 = vadd.f32 0.0, %v1582
    %v1584 = vpop.f32.mrf.mxu0
    %1585 = vdwg.mxu0
    %v1587 = vsel %vm284, %v1487, 0
    %1589 = vmatprep.subr.mxu0 0.0
    %1590 = vmatpush1.xpose.msra.mxu0 0.0
    %1591 = vmatprep.subr.mxu0 0.0
    %1592 = vmatpush1.xpose.msra.mxu0 0.0
    %1593 = vmatprep.subr.mxu0 0.0
    %1594 = vmatpush1.xpose.msra.mxu0 0.0
    %1595 = vmatprep.subr.mxu0 0.0
    %1596 = vmatpush1.xpose.msra.mxu0 0.0
    %1597 = vmatprep.subr.mxu0 0.0
    %1598 = vmatpush1.xpose.msra.mxu0 0.0
    %1599 = vmatprep.subr.mxu0 0.0
    %1600 = vmatpush1.xpose.msra.mxu0 0.0
    %1601 = vmatprep.subr.mxu0 0.0
    %1602 = vmatpush1.xpose.msra.mxu0 0.0
    %1603 = vmatprep.subr.mxu0 0.0
    %1604 = vmatpush1.xpose.msra.mxu0 0.0
    %1605 = vmatprep.subr.mxu0 0.0
    %1606 = vmatpush1.xpose.msra.mxu0 0.0
    %1607 = vmatprep.subr.mxu0 0.0
    %1608 = vmatpush1.xpose.msra.mxu0 0.0
    %1609 = vmatprep.subr.mxu0 0.0
    %1610 = vmatpush1.xpose.msra.mxu0 0.0
    %1611 = vmatprep.subr.mxu0 0.0
    %1612 = vmatpush1.xpose.msra.mxu0 0.0
    %1613 = vmatprep.subr.mxu0 0.0
    %1614 = vmatpush1.xpose.msra.mxu0 %v1499
    %1615 = vmatprep.subr.mxu0 0.0
    %1616 = vmatpush1.xpose.msra.mxu0 %v1496
    %1617 = vmatprep.subr.mxu0 0.0
    %1618 = vmatpush1.xpose.msra.mxu0 %v1493
    %1619 = vmatprep.subr.mxu0 0.0
    %1620 = vmatpush1.xpose.msra.mxu0 %v1490
    %1621 = vmatprep.subr.mxu0 0.0
    %1622 = vmatpush2.xpose.msra.mxu0 0.0
    %1623 = vmatprep.subr.mxu0 0.0
    %1624 = vmatpush2.xpose.msra.mxu0 0.0
    %1625 = vmatprep.subr.mxu0 0.0
    %1626 = vmatpush2.xpose.msra.mxu0 0.0
    %1627 = vmatprep.subr.mxu0 0.0
    %1628 = vmatpush2.xpose.msra.mxu0 0.0
    %1629 = vmatprep.subr.mxu0 0.0
    %1630 = vmatpush2.xpose.msra.mxu0 0.0
    %1631 = vmatprep.subr.mxu0 0.0
    %1632 = vmatpush2.xpose.msra.mxu0 0.0
    %1633 = vmatprep.subr.mxu0 0.0
    %1634 = vmatpush2.xpose.msra.mxu0 0.0
    %1635 = vmatprep.subr.mxu0 0.0
    %1636 = vmatpush2.xpose.msra.mxu0 0.0
    %1637 = vmatprep.subr.mxu0 0.0
    %1638 = vmatpush2.xpose.msra.mxu0 0.0
    %1639 = vmatprep.subr.mxu0 0.0
    %1640 = vmatpush2.xpose.msra.mxu0 0.0
    %1641 = vmatprep.subr.mxu0 0.0
    %1642 = vmatpush2.xpose.msra.mxu0 0.0
    %1643 = vmatprep.subr.mxu0 0.0
    %1644 = vmatpush2.xpose.msra.mxu0 0.0
    %1645 = vmatprep.subr.mxu0 0.0
    %1646 = vmatpush2.xpose.msra.mxu0 0.0
    %1647 = vmatprep.subr.mxu0 0.0
    %1648 = vmatpush2.xpose.msra.mxu0 0.0
    %1649 = vmatprep.subr.mxu0 0.0
    %1650 = vmatpush2.xpose.msra.mxu0 0.0
    %1651 = vmatprep.subr.mxu0 0.0
    %1652 = vmatpush2.xpose.msra.mxu0 0.0
    %1653 = vmatprep.mubr.f32.mxu0 0.0
    %1654 = vmatmul.mubr.f32.gmra.mxu0 %v1587
    %v1655 = vpop.f32.mrf.mxu0
    %v1656 = vadd.f32 0.0, %v1655
    %v1657 = vpop.f32.mrf.mxu0
    %1658 = vdwg.mxu0
    %1660 = vset.pattern.permute.xlu0 32
    %1661 = vperm.xlu0 %1660, %v1568
    %v1662 = vpop.permute.xlu0 %1661
    %1665 = vset.pattern.permute.xlu0 32
    %1666 = vperm.xlu0 %1665, %v1573
    %v1667 = vpop.permute.xlu0 %1666
    %1670 = vset.pattern.permute.xlu0 32
    %1671 = vperm.xlu0 %1670, %v1578
    %v1672 = vpop.permute.xlu0 %1671
    %1675 = vset.pattern.permute.xlu0 32
    %1676 = vperm.xlu0 %1675, %v1583
    %v1677 = vpop.permute.xlu0 %1676
    %v1679 = vlaneseq
    %v1680 = vshrl.u32 %v1679, 7
    %v1681 = vsub.s32 0, %v1680
    %v1682 = vrot.slane %v1656, %v1681
    %v1683 = vadd.f32 %v1662, %v1682
    %v1684 = vadd.f32 %v1667, %v1682
    %v1685 = vadd.f32 %v1672, %v1682
    %v1686 = vadd.f32 %v1677, %v1682
    %v1687 = vmul.f32 %v1683, 0.2
    %v1688 = vmul.f32 %v1684, 0.2
    %v1689 = vmul.f32 %v1685, 0.2
    %v1690 = vmul.f32 %v1686, 0.2
    %v1691 = vmax.f32 %v1683, %v1687
    %v1692 = vmax.f32 %v1684, %v1688
    %v1693 = vmax.f32 %v1685, %v1689
    %v1694 = vmax.f32 %v1686, %v1690
    %v1695 = vadd.f32 %v1691, %v61
    %v1696 = vadd.f32 %v1692, %v62
    %v1697 = vadd.f32 %v1693, %v63
    %v1698 = vadd.f32 %v1694, %v64
    %v1699 = vsel %vm284, %v1695, -inf
    %1700 = vmax.xlane.f32.xlu0 %v1699
    %v1701 = vpop.xlane.xlu0 %1700
    %v1702 = vsel %vm284, %v1696, -inf
    %1703 = vmax.xlane.f32.xlu0 %v1702
    %v1704 = vpop.xlane.xlu0 %1703
    %v1705 = vsel %vm284, %v1697, -inf
    %1706 = vmax.xlane.f32.xlu0 %v1705
    %v1707 = vpop.xlane.xlu0 %1706
    %v1708 = vsel %vm284, %v1698, -inf
    %1709 = vmax.xlane.f32.xlu0 %v1708
    %v1710 = vpop.xlane.xlu0 %1709
    %v1711 = vsub.f32 %v1695, %v1701
    %v1712 = vsub.f32 %v1696, %v1704
    %v1713 = vsub.f32 %v1697, %v1707
    %v1714 = vsub.f32 %v1698, %v1710
    %v1715 = vmul.f32 %v1711, 1.442695
    %v1716 = vpow.pop %v1715
    %v1717 = vmul.f32 %v1712, 1.442695
    %v1718 = vpow.pop %v1717
    %v1719 = vmul.f32 %v1713, 1.442695
    %v1720 = vpow.pop %v1719
    %v1721 = vmul.f32 %v1714, 1.442695
    %v1722 = vpow.pop %v1721
    %v1723 = vsel %vm284, %v1716, 0.0
    %1724 = vadd.xlane.f32.xlu0 %v1723
    %v1725 = vpop.xlane.xlu0 %1724
    %v1726 = vsel %vm284, %v1718, 0.0
    %1727 = vadd.xlane.f32.xlu0 %v1726
    %v1728 = vpop.xlane.xlu0 %1727
    %v1729 = vsel %vm284, %v1720, 0.0
    %1730 = vadd.xlane.f32.xlu0 %v1729
    %v1731 = vpop.xlane.xlu0 %1730
    %v1732 = vsel %vm284, %v1722, 0.0
    %1733 = vadd.xlane.f32.xlu0 %v1732
    %v1734 = vpop.xlane.xlu0 %1733
    %v1735 = vrcp.pop %v1725
    %v1736 = vrcp.pop %v1728
    %v1737 = vrcp.pop %v1731
    %v1738 = vrcp.pop %v1734
    %v1739 = vmul.f32 %v1716, %v1735
    %v1740 = vmul.f32 %v1718, %v1736
    %v1741 = vmul.f32 %v1720, %v1737
    %v1742 = vmul.f32 %v1722, %v1738
    %1743 = vset.pattern.permute.xlu0 33
    %1744 = vperm.xlu0 %1743, %v1568
    %v1745 = vpop.permute.xlu0 %1744
    %1747 = vset.pattern.permute.xlu0 33
    %1748 = vperm.xlu0 %1747, %v1573
    %v1749 = vpop.permute.xlu0 %1748
    %1751 = vset.pattern.permute.xlu0 33
    %1752 = vperm.xlu0 %1751, %v1578
    %v1753 = vpop.permute.xlu0 %1752
    %1755 = vset.pattern.permute.xlu0 33
    %1756 = vperm.xlu0 %1755, %v1583
    %v1757 = vpop.permute.xlu0 %1756
    %v1759 = vlaneseq
    %v1760 = vshrl.u32 %v1759, 7
    %v1761 = vsub.s32 1, %v1760
    %v1762 = vrot.slane %v1656, %v1761
    %v1763 = vadd.f32 %v1745, %v1762
    %v1764 = vadd.f32 %v1749, %v1762
    %v1765 = vadd.f32 %v1753, %v1762
    %v1766 = vadd.f32 %v1757, %v1762
    %v1767 = vmul.f32 %v1763, 0.2
    %v1768 = vmul.f32 %v1764, 0.2
    %v1769 = vmul.f32 %v1765, 0.2
    %v1770 = vmul.f32 %v1766, 0.2
    %v1771 = vmax.f32 %v1763, %v1767
    %v1772 = vmax.f32 %v1764, %v1768
    %v1773 = vmax.f32 %v1765, %v1769
    %v1774 = vmax.f32 %v1766, %v1770
    %v1775 = vadd.f32 %v1771, %v61
    %v1776 = vadd.f32 %v1772, %v62
    %v1777 = vadd.f32 %v1773, %v63
    %v1778 = vadd.f32 %v1774, %v64
    %v1779 = vsel %vm284, %v1775, -inf
    %1780 = vmax.xlane.f32.xlu0 %v1779
    %v1781 = vpop.xlane.xlu0 %1780
    %v1782 = vsel %vm284, %v1776, -inf
    %1783 = vmax.xlane.f32.xlu0 %v1782
    %v1784 = vpop.xlane.xlu0 %1783
    %v1785 = vsel %vm284, %v1777, -inf
    %1786 = vmax.xlane.f32.xlu0 %v1785
    %v1787 = vpop.xlane.xlu0 %1786
    %v1788 = vsel %vm284, %v1778, -inf
    %1789 = vmax.xlane.f32.xlu0 %v1788
    %v1790 = vpop.xlane.xlu0 %1789
    %v1791 = vsub.f32 %v1775, %v1781
    %v1792 = vsub.f32 %v1776, %v1784
    %v1793 = vsub.f32 %v1777, %v1787
    %v1794 = vsub.f32 %v1778, %v1790
    %v1795 = vmul.f32 %v1791, 1.442695
    %v1796 = vpow.pop %v1795
    %v1797 = vmul.f32 %v1792, 1.442695
    %v1798 = vpow.pop %v1797
    %v1799 = vmul.f32 %v1793, 1.442695
    %v1800 = vpow.pop %v1799
    %v1801 = vmul.f32 %v1794, 1.442695
    %v1802 = vpow.pop %v1801
    %v1803 = vsel %vm284, %v1796, 0.0
    %1804 = vadd.xlane.f32.xlu0 %v1803
    %v1805 = vpop.xlane.xlu0 %1804
    %v1806 = vsel %vm284, %v1798, 0.0
    %1807 = vadd.xlane.f32.xlu0 %v1806
    %v1808 = vpop.xlane.xlu0 %1807
    %v1809 = vsel %vm284, %v1800, 0.0
    %1810 = vadd.xlane.f32.xlu0 %v1809
    %v1811 = vpop.xlane.xlu0 %1810
    %v1812 = vsel %vm284, %v1802, 0.0
    %1813 = vadd.xlane.f32.xlu0 %v1812
    %v1814 = vpop.xlane.xlu0 %1813
    %v1815 = vrcp.pop %v1805
    %v1816 = vrcp.pop %v1808
    %v1817 = vrcp.pop %v1811
    %v1818 = vrcp.pop %v1814
    %v1819 = vmul.f32 %v1796, %v1815
    %v1820 = vmul.f32 %v1798, %v1816
    %v1821 = vmul.f32 %v1800, %v1817
    %v1822 = vmul.f32 %v1802, %v1818
    %1823 = vset.pattern.permute.xlu0 34
    %1824 = vperm.xlu0 %1823, %v1568
    %v1825 = vpop.permute.xlu0 %1824
    %1827 = vset.pattern.permute.xlu0 34
    %1828 = vperm.xlu0 %1827, %v1573
    %v1829 = vpop.permute.xlu0 %1828
    %1831 = vset.pattern.permute.xlu0 34
    %1832 = vperm.xlu0 %1831, %v1578
    %v1833 = vpop.permute.xlu0 %1832
    %1835 = vset.pattern.permute.xlu0 34
    %1836 = vperm.xlu0 %1835, %v1583
    %v1837 = vpop.permute.xlu0 %1836
    %v1839 = vlaneseq
    %v1840 = vshrl.u32 %v1839, 7
    %v1841 = vsub.s32 2, %v1840
    %v1842 = vrot.slane %v1656, %v1841
    %v1843 = vadd.f32 %v1825, %v1842
    %v1844 = vadd.f32 %v1829, %v1842
    %v1845 = vadd.f32 %v1833, %v1842
    %v1846 = vadd.f32 %v1837, %v1842
    %v1847 = vmul.f32 %v1843, 0.2
    %v1848 = vmul.f32 %v1844, 0.2
    %v1849 = vmul.f32 %v1845, 0.2
    %v1850 = vmul.f32 %v1846, 0.2
    %v1851 = vmax.f32 %v1843, %v1847
    %v1852 = vmax.f32 %v1844, %v1848
    %v1853 = vmax.f32 %v1845, %v1849
    %v1854 = vmax.f32 %v1846, %v1850
    %v1855 = vadd.f32 %v1851, %v61
    %v1856 = vadd.f32 %v1852, %v62
    %v1857 = vadd.f32 %v1853, %v63
    %v1858 = vadd.f32 %v1854, %v64
    %v1859 = vsel %vm284, %v1855, -inf
    %1860 = vmax.xlane.f32.xlu0 %v1859
    %v1861 = vpop.xlane.xlu0 %1860
    %v1862 = vsel %vm284, %v1856, -inf
    %1863 = vmax.xlane.f32.xlu0 %v1862
    %v1864 = vpop.xlane.xlu0 %1863
    %v1865 = vsel %vm284, %v1857, -inf
    %1866 = vmax.xlane.f32.xlu0 %v1865
    %v1867 = vpop.xlane.xlu0 %1866
    %v1868 = vsel %vm284, %v1858, -inf
    %1869 = vmax.xlane.f32.xlu0 %v1868
    %v1870 = vpop.xlane.xlu0 %1869
    %v1871 = vsub.f32 %v1855, %v1861
    %v1872 = vsub.f32 %v1856, %v1864
    %v1873 = vsub.f32 %v1857, %v1867
    %v1874 = vsub.f32 %v1858, %v1870
    %v1875 = vmul.f32 %v1871, 1.442695
    %v1876 = vpow.pop %v1875
    %v1877 = vmul.f32 %v1872, 1.442695
    %v1878 = vpow.pop %v1877
    %v1879 = vmul.f32 %v1873, 1.442695
    %v1880 = vpow.pop %v1879
    %v1881 = vmul.f32 %v1874, 1.442695
    %v1882 = vpow.pop %v1881
    %v1883 = vsel %vm284, %v1876, 0.0
    %1884 = vadd.xlane.f32.xlu0 %v1883
    %v1885 = vpop.xlane.xlu0 %1884
    %v1886 = vsel %vm284, %v1878, 0.0
    %1887 = vadd.xlane.f32.xlu0 %v1886
    %v1888 = vpop.xlane.xlu0 %1887
    %v1889 = vsel %vm284, %v1880, 0.0
    %1890 = vadd.xlane.f32.xlu0 %v1889
    %v1891 = vpop.xlane.xlu0 %1890
    %v1892 = vsel %vm284, %v1882, 0.0
    %1893 = vadd.xlane.f32.xlu0 %v1892
    %v1894 = vpop.xlane.xlu0 %1893
    %v1895 = vrcp.pop %v1885
    %v1896 = vrcp.pop %v1888
    %v1897 = vrcp.pop %v1891
    %v1898 = vrcp.pop %v1894
    %v1899 = vmul.f32 %v1876, %v1895
    %v1900 = vmul.f32 %v1878, %v1896
    %v1901 = vmul.f32 %v1880, %v1897
    %v1902 = vmul.f32 %v1882, %v1898
    %1903 = vset.pattern.permute.xlu0 35
    %1904 = vperm.xlu0 %1903, %v1568
    %v1905 = vpop.permute.xlu0 %1904
    %1907 = vset.pattern.permute.xlu0 35
    %1908 = vperm.xlu0 %1907, %v1573
    %v1909 = vpop.permute.xlu0 %1908
    %1911 = vset.pattern.permute.xlu0 35
    %1912 = vperm.xlu0 %1911, %v1578
    %v1913 = vpop.permute.xlu0 %1912
    %1915 = vset.pattern.permute.xlu0 35
    %1916 = vperm.xlu0 %1915, %v1583
    %v1917 = vpop.permute.xlu0 %1916
    %v1919 = vlaneseq
    %v1920 = vshrl.u32 %v1919, 7
    %v1921 = vsub.s32 3, %v1920
    %v1922 = vrot.slane %v1656, %v1921
    %v1923 = vadd.f32 %v1905, %v1922
    %v1924 = vadd.f32 %v1909, %v1922
    %v1925 = vadd.f32 %v1913, %v1922
    %v1926 = vadd.f32 %v1917, %v1922
    %v1927 = vmul.f32 %v1923, 0.2
    %v1928 = vmul.f32 %v1924, 0.2
    %v1929 = vmul.f32 %v1925, 0.2
    %v1930 = vmul.f32 %v1926, 0.2
    %v1931 = vmax.f32 %v1923, %v1927
    %v1932 = vmax.f32 %v1924, %v1928
    %v1933 = vmax.f32 %v1925, %v1929
    %v1934 = vmax.f32 %v1926, %v1930
    %v1935 = vadd.f32 %v1931, %v61
    %v1936 = vadd.f32 %v1932, %v62
    %v1937 = vadd.f32 %v1933, %v63
    %v1938 = vadd.f32 %v1934, %v64
    %v1939 = vsel %vm284, %v1935, -inf
    %1940 = vmax.xlane.f32.xlu0 %v1939
    %v1941 = vpop.xlane.xlu0 %1940
    %v1942 = vsel %vm284, %v1936, -inf
    %1943 = vmax.xlane.f32.xlu0 %v1942
    %v1944 = vpop.xlane.xlu0 %1943
    %v1945 = vsel %vm284, %v1937, -inf
    %1946 = vmax.xlane.f32.xlu0 %v1945
    %v1947 = vpop.xlane.xlu0 %1946
    %v1948 = vsel %vm284, %v1938, -inf
    %1949 = vmax.xlane.f32.xlu0 %v1948
    %v1950 = vpop.xlane.xlu0 %1949
    %v1951 = vsub.f32 %v1935, %v1941
    %v1952 = vsub.f32 %v1936, %v1944
    %v1953 = vsub.f32 %v1937, %v1947
    %v1954 = vsub.f32 %v1938, %v1950
    %v1955 = vmul.f32 %v1951, 1.442695
    %v1956 = vpow.pop %v1955
    %v1957 = vmul.f32 %v1952, 1.442695
    %v1958 = vpow.pop %v1957
    %v1959 = vmul.f32 %v1953, 1.442695
    %v1960 = vpow.pop %v1959
    %v1961 = vmul.f32 %v1954, 1.442695
    %v1962 = vpow.pop %v1961
    %v1963 = vsel %vm284, %v1956, 0.0
    %1964 = vadd.xlane.f32.xlu0 %v1963
    %v1965 = vpop.xlane.xlu0 %1964
    %v1966 = vsel %vm284, %v1958, 0.0
    %1967 = vadd.xlane.f32.xlu0 %v1966
    %v1968 = vpop.xlane.xlu0 %1967
    %v1969 = vsel %vm284, %v1960, 0.0
    %1970 = vadd.xlane.f32.xlu0 %v1969
    %v1971 = vpop.xlane.xlu0 %1970
    %v1972 = vsel %vm284, %v1962, 0.0
    %1973 = vadd.xlane.f32.xlu0 %v1972
    %v1974 = vpop.xlane.xlu0 %1973
    %v1975 = vrcp.pop %v1965
    %v1976 = vrcp.pop %v1968
    %v1977 = vrcp.pop %v1971
    %v1978 = vrcp.pop %v1974
    %v1979 = vmul.f32 %v1956, %v1975
    %v1980 = vmul.f32 %v1958, %v1976
    %v1981 = vmul.f32 %v1960, %v1977
    %v1982 = vmul.f32 %v1962, %v1978
    %1987 = vrot.lane.b32.xlu0 %v1819, 32
    %v1988 = vpop.permute.xlu0 %1987
    %1989 = vrot.lane.b32.xlu0 %v1820, 32
    %v1990 = vpop.permute.xlu0 %1989
    %1991 = vrot.lane.b32.xlu0 %v1821, 32
    %v1992 = vpop.permute.xlu0 %1991
    %1993 = vrot.lane.b32.xlu0 %v1822, 32
    %v1994 = vpop.permute.xlu0 %1993
    %2003 = vrot.lane.b32.xlu0 %v1899, 64
    %v2004 = vpop.permute.xlu0 %2003
    %2005 = vrot.lane.b32.xlu0 %v1900, 64
    %v2006 = vpop.permute.xlu0 %2005
    %2007 = vrot.lane.b32.xlu0 %v1901, 64
    %v2008 = vpop.permute.xlu0 %2007
    %2009 = vrot.lane.b32.xlu0 %v1902, 64
    %v2010 = vpop.permute.xlu0 %2009
    %2019 = vrot.lane.b32.xlu0 %v1979, 96
    %v2020 = vpop.permute.xlu0 %2019
    %2021 = vrot.lane.b32.xlu0 %v1980, 96
    %v2022 = vpop.permute.xlu0 %2021
    %2023 = vrot.lane.b32.xlu0 %v1981, 96
    %v2024 = vpop.permute.xlu0 %2023
    %2025 = vrot.lane.b32.xlu0 %v1982, 96
    %v2026 = vpop.permute.xlu0 %2025
    %v2031 = vsel %vm284, %v1739, %v1988
    %v2032 = vsel %vm284, %v1740, %v1990
    %v2033 = vsel %vm284, %v1741, %v1992
    %v2034 = vsel %vm284, %v1742, %v1994
    %v2035 = vsel %vm621, %v2031, %v2004
    %v2036 = vsel %vm621, %v2032, %v2006
    %v2037 = vsel %vm621, %v2033, %v2008
    %v2038 = vsel %vm621, %v2034, %v2010
    %v2039 = vsel %vm626, %v2035, %v2020
    %v2040 = vsel %vm626, %v2036, %v2022
    %v2041 = vsel %vm626, %v2037, %v2024
    %v2042 = vsel %vm626, %v2038, %v2026
    %v2043 = vsel %vm635, %v1568, 0.0
    %v2044 = vsel %vm635, %v1573, 0.0
    %v2045 = vsel %vm635, %v1578, 0.0
    %v2046 = vsel %vm635, %v1583, 0.0
    %v2047 = vsel %vm642, %v1568, 0.0
    %v2048 = vsel %vm642, %v1573, 0.0
    %v2049 = vsel %vm642, %v1578, 0.0
    %v2050 = vsel %vm642, %v1583, 0.0
    %v2051 = vsel %vm649, %v1568, 0.0
    %v2052 = vsel %vm649, %v1573, 0.0
    %v2053 = vsel %vm649, %v1578, 0.0
    %v2054 = vsel %vm649, %v1583, 0.0
    %v2055 = vsel %vm656, %v1568, 0.0
    %v2056 = vsel %vm656, %v1573, 0.0
    %v2057 = vsel %vm656, %v1578, 0.0
    %v2058 = vsel %vm656, %v1583, 0.0
    %2059 = vmatprep.subr.mxu0 0.0
    %2060 = vmatpush1.msra.mxu0 %v2058
    %2061 = vmatprep.subr.mxu0 0.0
    %2062 = vmatpush1.msra.mxu0 %v2057
    %2063 = vmatprep.subr.mxu0 0.0
    %2064 = vmatpush1.msra.mxu0 %v2056
    %2065 = vmatprep.subr.mxu0 0.0
    %2066 = vmatpush1.msra.mxu0 %v2055
    %2067 = vmatprep.subr.mxu0 0.0
    %2068 = vmatpush1.msra.mxu0 %v2054
    %2069 = vmatprep.subr.mxu0 0.0
    %2070 = vmatpush1.msra.mxu0 %v2053
    %2071 = vmatprep.subr.mxu0 0.0
    %2072 = vmatpush1.msra.mxu0 %v2052
    %2073 = vmatprep.subr.mxu0 0.0
    %2074 = vmatpush1.msra.mxu0 %v2051
    %2075 = vmatprep.subr.mxu0 0.0
    %2076 = vmatpush1.msra.mxu0 %v2050
    %2077 = vmatprep.subr.mxu0 0.0
    %2078 = vmatpush1.msra.mxu0 %v2049
    %2079 = vmatprep.subr.mxu0 0.0
    %2080 = vmatpush1.msra.mxu0 %v2048
    %2081 = vmatprep.subr.mxu0 0.0
    %2082 = vmatpush1.msra.mxu0 %v2047
    %2083 = vmatprep.subr.mxu0 0.0
    %2084 = vmatpush1.msra.mxu0 %v2046
    %2085 = vmatprep.subr.mxu0 0.0
    %2086 = vmatpush1.msra.mxu0 %v2045
    %2087 = vmatprep.subr.mxu0 0.0
    %2088 = vmatpush1.msra.mxu0 %v2044
    %2089 = vmatprep.subr.mxu0 0.0
    %2090 = vmatpush1.msra.mxu0 %v2043
    %2091 = vmatprep.subr.mxu0 0.0
    %2092 = vmatpush2.msra.mxu0 0.0
    %2093 = vmatprep.subr.mxu0 0.0
    %2094 = vmatpush2.msra.mxu0 0.0
    %2095 = vmatprep.subr.mxu0 0.0
    %2096 = vmatpush2.msra.mxu0 0.0
    %2097 = vmatprep.subr.mxu0 0.0
    %2098 = vmatpush2.msra.mxu0 0.0
    %2099 = vmatprep.subr.mxu0 0.0
    %2100 = vmatpush2.msra.mxu0 0.0
    %2101 = vmatprep.subr.mxu0 0.0
    %2102 = vmatpush2.msra.mxu0 0.0
    %2103 = vmatprep.subr.mxu0 0.0
    %2104 = vmatpush2.msra.mxu0 0.0
    %2105 = vmatprep.subr.mxu0 0.0
    %2106 = vmatpush2.msra.mxu0 0.0
    %2107 = vmatprep.subr.mxu0 0.0
    %2108 = vmatpush2.msra.mxu0 0.0
    %2109 = vmatprep.subr.mxu0 0.0
    %2110 = vmatpush2.msra.mxu0 0.0
    %2111 = vmatprep.subr.mxu0 0.0
    %2112 = vmatpush2.msra.mxu0 0.0
    %2113 = vmatprep.subr.mxu0 0.0
    %2114 = vmatpush2.msra.mxu0 0.0
    %2115 = vmatprep.subr.mxu0 0.0
    %2116 = vmatpush2.msra.mxu0 0.0
    %2117 = vmatprep.subr.mxu0 0.0
    %2118 = vmatpush2.msra.mxu0 0.0
    %2119 = vmatprep.subr.mxu0 0.0
    %2120 = vmatpush2.msra.mxu0 0.0
    %2121 = vmatprep.subr.mxu0 0.0
    %2122 = vmatpush2.msra.mxu0 0.0
    %2123 = vmatprep.mubr.f32.mxu0 0.0
    %2124 = vmatmul.mubr.f32.gmra.mxu0 %v2039
    %v2125 = vpop.f32.mrf.mxu0
    %v2126 = vadd.f32 %v1479, %v2125
    %v2127 = vpop.f32.mrf.mxu0
    %2128 = vmatprep.mubr.f32.mxu0 0.0
    %2129 = vmatmul.mubr.f32.gmra.mxu0 %v2040
    %v2130 = vpop.f32.mrf.mxu0
    %v2131 = vadd.f32 %v1480, %v2130
    %v2132 = vpop.f32.mrf.mxu0
    %2133 = vmatprep.mubr.f32.mxu0 0.0
    %2134 = vmatmul.mubr.f32.gmra.mxu0 %v2041
    %v2135 = vpop.f32.mrf.mxu0
    %v2136 = vadd.f32 %v1481, %v2135
    %v2137 = vpop.f32.mrf.mxu0
    %2138 = vmatprep.mubr.f32.mxu0 0.0
    %2139 = vmatmul.mubr.f32.gmra.mxu0 %v2042
    %v2140 = vpop.f32.mrf.mxu0
    %v2141 = vadd.f32 %v1482, %v2140
    %v2142 = vpop.f32.mrf.mxu0
    %2143 = vdwg.mxu0
    %v2144 = vlaneseq
    %v2145 = vshrl.u32 %v2144, 7
    %v2146 = vsub.s32 0, %v2145
    %v2147 = vrot.slane %v1488, %v2146
    %v2148 = vadd.f32 %v2126, %v2147
    %v2149 = vadd.f32 %v2131, %v2147
    %v2150 = vadd.f32 %v2136, %v2147
    %v2151 = vadd.f32 %v2141, %v2147
    %2156 = vrot.lane.b32.xlu0 %v2148, 120
    %v2157 = vpop.permute.xlu0 %2156
    %2158 = vrot.lane.b32.xlu0 %v2149, 120
    %v2159 = vpop.permute.xlu0 %2158
    %2160 = vrot.lane.b32.xlu0 %v2150, 120
    %v2161 = vpop.permute.xlu0 %2160
    %2162 = vrot.lane.b32.xlu0 %v2151, 120
    %v2163 = vpop.permute.xlu0 %2162
    %v2168 = vadd.f32 %v2148, %v2157
    %v2169 = vadd.f32 %v2149, %v2159
    %v2170 = vadd.f32 %v2150, %v2161
    %v2171 = vadd.f32 %v2151, %v2163
    %2172 = vrot.lane.b32.xlu0 %v2148, 112
    %v2173 = vpop.permute.xlu0 %2172
    %2174 = vrot.lane.b32.xlu0 %v2149, 112
    %v2175 = vpop.permute.xlu0 %2174
    %2176 = vrot.lane.b32.xlu0 %v2150, 112
    %v2177 = vpop.permute.xlu0 %2176
    %2178 = vrot.lane.b32.xlu0 %v2151, 112
    %v2179 = vpop.permute.xlu0 %2178
    %v2184 = vadd.f32 %v2168, %v2173
    %v2185 = vadd.f32 %v2169, %v2175
    %v2186 = vadd.f32 %v2170, %v2177
    %v2187 = vadd.f32 %v2171, %v2179
    %2188 = vrot.lane.b32.xlu0 %v2148, 104
    %v2189 = vpop.permute.xlu0 %2188
    %2190 = vrot.lane.b32.xlu0 %v2149, 104
    %v2191 = vpop.permute.xlu0 %2190
    %2192 = vrot.lane.b32.xlu0 %v2150, 104
    %v2193 = vpop.permute.xlu0 %2192
    %2194 = vrot.lane.b32.xlu0 %v2151, 104
    %v2195 = vpop.permute.xlu0 %2194
    %v2200 = vadd.f32 %v2184, %v2189
    %v2201 = vadd.f32 %v2185, %v2191
    %v2202 = vadd.f32 %v2186, %v2193
    %v2203 = vadd.f32 %v2187, %v2195
    %v2204 = vmul.f32 %v2200, 0.25
    %v2205 = vmul.f32 %v2201, 0.25
    %v2206 = vmul.f32 %v2202, 0.25
    %v2207 = vmul.f32 %v2203, 0.25
    %vm2208 = vcmask 64512
    %2209 = vst.msk [vmem:[%s5] sm:$0xff] %vm2208, %v2204
    %2210 = vst.msk [vmem:[%s5 + $0x8] sm:$0xff] %vm2208, %v2205
    %2211 = vst.msk [vmem:[%s5 + $0x10] sm:$0xff] %vm2208, %v2206
    %2212 = vst.msk [vmem:[%s5 + $0x18] sm:$0xff] %vm2208, %v2207
    // Predicated region
    $region34: #{tpu_custom_call.1} parent=1 // pred_check
      _
    $region35: #{tpu_custom_call.1} parent=1 // pred_check_branch
      %2214 = sbr.rel (0) target = $region37
    $region36: #{tpu_custom_call.1} parent=1 // pred_region
      _
    $region37: #{tpu_custom_call.1} parent=1 // pred_fallthru
      _
    // Predicated region
    $region38: #{tpu_custom_call.1} parent=1 // pred_check
      _
    $region39: #{tpu_custom_call.1} parent=1 // pred_check_branch
      %2216 = sbr.rel (0) target = $region41
    $region40: #{tpu_custom_call.1} parent=1 // pred_region
      _
    $region41: #{tpu_custom_call.1} parent=1 // pred_fallthru
      _
    %2217 = vsyncpa [#allocation3], 1
    %2218 = vsyncpa [#allocation5], 1

</llo_original>
